<compile_context>
chip_gen: v6e
topology: v6e:2x2x1
jax: 0.10.0
libtpu: 0.0.40
codegen_flags: <defaults>
</compile_context>

<pallas_src>
import functools

import jax
import jax.numpy as jnp
import numpy as np
from jax import lax
from jax.experimental import pallas as pl
from jax.experimental.pallas import tpu as pltpu


def mpnn_kernel(edge_ref, nodes_ref, mask_ref, wi_ref, wh_ref, bi_ref, bh_ref,
                out_ref, *, n_max, hidden_dim, mpnn_steps, compute_dtype):
    """One batch element per grid step.

    edge_ref  : (1, nH, nH)   E[i*H+k, j*H+d] = edge_wgt[i, j, d, k]   (compute_dtype)
    nodes_ref : (1, 1, nH)    lane-dense node state (f32)
    mask_ref  : (1, 1, nH)    node mask broadcast over H (f32)
    wi_ref/wh_ref : (nH, 3*nH) block-diagonal GRU gate weights (r|z|n)
    bi_ref/bh_ref : (1, 3*nH)  per-node-tiled gate biases (f32)
    out_ref   : (1, 1, nH)
    """
    nH = n_max * hidden_dim
    inv = 1.0 / float(n_max * n_max)

    h0 = nodes_ref[0].astype(jnp.float32)      # (1, nH)  lane-dense carry
    m = mask_ref[0].astype(jnp.float32)        # (1, nH)  hoisted (no per-step broadcast)
    bi = bi_ref[...]                           # (1, 3*nH) f32
    bh = bh_ref[...]                           # (1, 3*nH) f32

    def step(_, h):
        # message pass: single (1, nH) x (nH, nH) MXU matmul, f32 accumulation
        msg = jnp.dot(h.astype(compute_dtype), edge_ref[0],
                      preferred_element_type=jnp.float32) * inv       # (1, nH)

        # torch.nn.GRUCell, all six gate matmuls fused into two MXU matmuls
        gi = jnp.dot(msg.astype(compute_dtype), wi_ref[...],
                     preferred_element_type=jnp.float32) + bi          # (1, 3nH)
        gh = jnp.dot(h.astype(compute_dtype), wh_ref[...],
                     preferred_element_type=jnp.float32) + bh          # (1, 3nH)

        # gate slices are 128-aligned (each gate block is n*H lanes wide)
        r = jax.nn.sigmoid(gi[:, :nH] + gh[:, :nH])
        z = jax.nn.sigmoid(gi[:, nH:2 * nH] + gh[:, nH:2 * nH])
        c = jnp.tanh(gi[:, 2 * nH:] + r * gh[:, 2 * nH:])
        h_new = (1.0 - z) * c + z * h
        return h_new * m                                               # node mask

    h = lax.fori_loop(0, mpnn_steps, step, h0, unroll=(mpnn_steps <= 8))
    out_ref[0] = h.astype(out_ref.dtype)


def mpnn_forward(edge_wgt, nodes_embed, mask, weight_ih, weight_hh, bias_ih,
                 bias_hh, *, mpnn_steps, compute_dtype=jnp.bfloat16):
    B, n, _, H, _ = edge_wgt.shape
    nH = n * H
    out_dtype = nodes_embed.dtype

    # ---- layout plumbing (plain XLA, outside the kernel) --------------------
    # edge (b,i,j,d,k) -> (b, i*H+k, j*H+d): message pass becomes ONE matmul.
    edge_mat = jnp.transpose(edge_wgt, (0, 1, 4, 2, 3)).reshape(B, nH, nH)
    edge_mat = edge_mat.astype(compute_dtype)

    # lane-dense node state / mask / output slabs: (B, 1, n*H)
    nodes_flat = nodes_embed.reshape(B, 1, nH).astype(jnp.float32)
    mask_flat = jnp.broadcast_to(mask.astype(jnp.float32),
                                 (B, n, H)).reshape(B, 1, nH)

    # Block-diagonal GRU gate weights: Wbd[p*H+k, g*nH + j*H + d]
    #   = [p == j] * weight[g*H + d, k]   (gate order r, z, n as in torch)
    eye = jnp.eye(n, dtype=jnp.float32)
    w_ih3 = weight_ih.reshape(3, H, H)        # [gate, out(d), in(k)]
    w_hh3 = weight_hh.reshape(3, H, H)
    wi_bd = jnp.einsum('pj,gdk->pkgjd', eye, w_ih3).reshape(nH, 3 * nH)
    wh_bd = jnp.einsum('pj,gdk->pkgjd', eye, w_hh3).reshape(nH, 3 * nH)
    wi_bd = wi_bd.astype(compute_dtype)
    wh_bd = wh_bd.astype(compute_dtype)
    bi_flat = jnp.broadcast_to(bias_ih.reshape(3, 1, H),
                               (3, n, H)).reshape(1, 3 * nH).astype(jnp.float32)
    bh_flat = jnp.broadcast_to(bias_hh.reshape(3, 1, H),
                               (3, n, H)).reshape(1, 3 * nH).astype(jnp.float32)

    # explicit VMEM budget (edge block is double-buffered; weights are grid-constant)
    itemsize = jnp.dtype(compute_dtype).itemsize
    vmem_need = (2 * nH * nH * itemsize            # edge block, double-buffered
                 + 4 * nH * 3 * nH * itemsize      # wi/wh block-diag weights
                 + 16 * 3 * nH * 4)                # biases / state / mask / out
    vmem_limit = int(min(64 * 1024 * 1024, max(32 * 1024 * 1024, 2 * vmem_need)))

    kernel = functools.partial(mpnn_kernel, n_max=n, hidden_dim=H,
                               mpnn_steps=mpnn_steps, compute_dtype=compute_dtype)
    out_flat = pl.pallas_call(
        kernel,
        out_shape=jax.ShapeDtypeStruct((B, 1, nH), out_dtype),
        grid_spec=pltpu.PrefetchScalarGridSpec(
            num_scalar_prefetch=0,
            grid=(B,),
            in_specs=[
                pl.BlockSpec((1, nH, nH), lambda b: (b, 0, 0)),    # edge matrix
                pl.BlockSpec((1, 1, nH), lambda b: (b, 0, 0)),     # node state
                pl.BlockSpec((1, 1, nH), lambda b: (b, 0, 0)),     # mask
                pl.BlockSpec((nH, 3 * nH), lambda b: (0, 0)),      # Wi (block-diag)
                pl.BlockSpec((nH, 3 * nH), lambda b: (0, 0)),      # Wh (block-diag)
                pl.BlockSpec((1, 3 * nH), lambda b: (0, 0)),       # b_ih
                pl.BlockSpec((1, 3 * nH), lambda b: (0, 0)),       # b_hh
            ],
            out_specs=pl.BlockSpec((1, 1, nH), lambda b: (b, 0, 0)),
        ),
        compiler_params=pltpu.CompilerParams(
            dimension_semantics=("parallel",),
            vmem_limit_bytes=vmem_limit),
    )(edge_mat, nodes_flat, mask_flat, wi_bd, wh_bd, bi_flat, bh_flat)
    return out_flat.reshape(B, n, H)


def mpnn_reference(edge_wgt, nodes_embed, mask, weight_ih, weight_hh, bias_ih,
                   bias_hh, *, mpnn_steps):
    """Pure-JAX, full-precision reference matching the PyTorch forward exactly."""
    B, n, _, H, _ = edge_wgt.shape
    h = nodes_embed
    for _ in range(mpnn_steps):
        msg = jnp.einsum('bijdk,bik->bjd', edge_wgt, h,
                         precision='highest') / (n * n)
        gi = jnp.einsum('bnk,gk->bng', msg, weight_ih, precision='highest') + bias_ih
        gh = jnp.einsum('bnk,gk->bng', h, weight_hh, precision='highest') + bias_hh
        r = jax.nn.sigmoid(gi[..., :H] + gh[..., :H])
        z = jax.nn.sigmoid(gi[..., H:2 * H] + gh[..., H:2 * H])
        c = jnp.tanh(gi[..., 2 * H:] + r * gh[..., 2 * H:])
        h = (1.0 - z) * c + z * h
        h = h * mask
    return h


if __name__ == "__main__":
    batch_size, n_max, hidden_dim, mpnn_steps = 2, 8, 32, 3

    key = jax.random.PRNGKey(0)
    k_e, k_n, k_m, k_wi, k_wh, k_bi, k_bh = jax.random.split(key, 7)

    edge_wgt = 0.1 * jax.random.normal(
        k_e, (batch_size, n_max, n_max, hidden_dim, hidden_dim), jnp.float32)
    nodes_embed = jax.random.normal(k_n, (batch_size, n_max, hidden_dim), jnp.float32)
    mask = (jax.random.uniform(k_m, (batch_size, n_max, 1)) < 0.8).astype(jnp.float32)

    # torch.nn.GRUCell default init: uniform(-1/sqrt(H), 1/sqrt(H))
    bound = 1.0 / np.sqrt(hidden_dim)
    weight_ih = jax.random.uniform(k_wi, (3 * hidden_dim, hidden_dim),
                                   jnp.float32, -bound, bound)
    weight_hh = jax.random.uniform(k_wh, (3 * hidden_dim, hidden_dim),
                                   jnp.float32, -bound, bound)
    bias_ih = jax.random.uniform(k_bi, (3 * hidden_dim,), jnp.float32, -bound, bound)
    bias_hh = jax.random.uniform(k_bh, (3 * hidden_dim,), jnp.float32, -bound, bound)

    # fast (default, bf16 MXU operands) path
    out_bf16 = mpnn_forward(edge_wgt, nodes_embed, mask, weight_ih, weight_hh,
                            bias_ih, bias_hh, mpnn_steps=mpnn_steps)
    out_bf16 = jax.block_until_ready(out_bf16)

    # f32 path (same kernel, full-precision operands) to pin down the semantics
    out_f32 = mpnn_forward(edge_wgt, nodes_embed, mask, weight_ih, weight_hh,
                           bias_ih, bias_hh, mpnn_steps=mpnn_steps,
                           compute_dtype=jnp.float32)
    out_f32 = jax.block_until_ready(out_f32)

    ref = mpnn_reference(edge_wgt, nodes_embed, mask, weight_ih, weight_hh,
                         bias_ih, bias_hh, mpnn_steps=mpnn_steps)
    ref = jax.block_until_ready(ref)

    np.testing.assert_allclose(np.asarray(out_f32), np.asarray(ref),
                               rtol=1e-3, atol=1e-3)
    # tolerance sized for bf16 operand rounding in the message / GRU matmuls
    np.testing.assert_allclose(np.asarray(out_bf16), np.asarray(ref),
                               rtol=5e-2, atol=5e-2)
    print("KERNEL_OK")
</pallas_src>

<mosaic_0001>
module attributes {stable_mosaic.version = 11 : i64} {
  func.func @mpnn_kernel(%arg0: i32, %arg1: memref<1x256x256xbf16, #tpu.memory_space<vmem>>, %arg2: memref<1x1x256xf32, #tpu.memory_space<vmem>>, %arg3: memref<1x1x256xf32, #tpu.memory_space<vmem>>, %arg4: memref<256x768xbf16, #tpu.memory_space<vmem>>, %arg5: memref<256x768xbf16, #tpu.memory_space<vmem>>, %arg6: memref<1x768xf32, #tpu.memory_space<vmem>>, %arg7: memref<1x768xf32, #tpu.memory_space<vmem>>, %arg8: memref<1x1x256xf32, #tpu.memory_space<vmem>>) attributes {dimension_semantics = [#tpu.dimension_semantics<parallel>], iteration_bounds = array<i64: 2>, scalar_prefetch = 0 : i64, scratch_operands = 0 : i64, tpu.core_type = #tpu.core_type<tc>, window_params = [{transform_indices = @transform_0, window_bounds = array<i64: 1, 256, 256>}, {transform_indices = @transform_1, window_bounds = array<i64: 1, 1, 256>}, {transform_indices = @transform_2, window_bounds = array<i64: 1, 1, 256>}, {pipeline_mode = #tpu.pipeline_mode<synchronous>, transform_indices = @transform_3, window_bounds = array<i64: 256, 768>}, {pipeline_mode = #tpu.pipeline_mode<synchronous>, transform_indices = @transform_4, window_bounds = array<i64: 256, 768>}, {pipeline_mode = #tpu.pipeline_mode<synchronous>, transform_indices = @transform_5, window_bounds = array<i64: 1, 768>}, {pipeline_mode = #tpu.pipeline_mode<synchronous>, transform_indices = @transform_6, window_bounds = array<i64: 1, 768>}, {transform_indices = @transform_7, window_bounds = array<i64: 1, 1, 256>}]} {
    %c0 = arith.constant 0 : index
    %c0_0 = arith.constant 0 : index
    %c0_1 = arith.constant 0 : index
    %0 = vector.load %arg2[%c0, %c0_0, %c0_1] : memref<1x1x256xf32, #tpu.memory_space<vmem>>, vector<1x1x256xf32>
    %1 = vector.shape_cast %0 : vector<1x1x256xf32> to vector<1x256xf32>
    %c0_2 = arith.constant 0 : index
    %c0_3 = arith.constant 0 : index
    %c0_4 = arith.constant 0 : index
    %2 = vector.load %arg3[%c0_2, %c0_3, %c0_4] : memref<1x1x256xf32, #tpu.memory_space<vmem>>, vector<1x1x256xf32>
    %3 = vector.shape_cast %2 : vector<1x1x256xf32> to vector<1x256xf32>
    %c0_5 = arith.constant 0 : index
    %c0_6 = arith.constant 0 : index
    %4 = vector.load %arg6[%c0_5, %c0_6] : memref<1x768xf32, #tpu.memory_space<vmem>>, vector<1x768xf32>
    %c0_7 = arith.constant 0 : index
    %c0_8 = arith.constant 0 : index
    %5 = vector.load %arg7[%c0_7, %c0_8] : memref<1x768xf32, #tpu.memory_space<vmem>>, vector<1x768xf32>
    %c0_i32 = arith.constant 0 : i32
    %6 = arith.truncf %1 : vector<1x256xf32> to vector<1x256xbf16>
    %c0_9 = arith.constant 0 : index
    %c0_10 = arith.constant 0 : index
    %c0_11 = arith.constant 0 : index
    %7 = vector.load %arg1[%c0_9, %c0_10, %c0_11] : memref<1x256x256xbf16, #tpu.memory_space<vmem>>, vector<1x256x256xbf16>
    %8 = vector.shape_cast %7 : vector<1x256x256xbf16> to vector<256x256xbf16>
    %cst = arith.constant dense<0.000000e+00> : vector<1x256xf32>
    %9 = tpu.matmul %6, %8, %cst {dimension_numbers = #tpu.dot_dimension_numbers<[1], [0], [0], [1], [0, 0, 1, 1], [], []>} : vector<1x256xbf16>, vector<256x256xbf16>, vector<1x256xf32> -> vector<1x256xf32>
    %cst_12 = arith.constant 1.562500e-02 : f32
    %10 = vector.broadcast %cst_12 : f32 to vector<1x256xf32>
    %11 = arith.mulf %9, %10 : vector<1x256xf32>
    %12 = arith.truncf %11 : vector<1x256xf32> to vector<1x256xbf16>
    %c0_13 = arith.constant 0 : index
    %c0_14 = arith.constant 0 : index
    %13 = vector.load %arg4[%c0_13, %c0_14] : memref<256x768xbf16, #tpu.memory_space<vmem>>, vector<256x768xbf16>
    %cst_15 = arith.constant dense<0.000000e+00> : vector<1x768xf32>
    %14 = tpu.matmul %12, %13, %cst_15 {dimension_numbers = #tpu.dot_dimension_numbers<[1], [0], [0], [1], [0, 0, 1, 1], [], []>} : vector<1x256xbf16>, vector<256x768xbf16>, vector<1x768xf32> -> vector<1x768xf32>
    %15 = arith.addf %14, %4 : vector<1x768xf32>
    %16 = arith.truncf %1 : vector<1x256xf32> to vector<1x256xbf16>
    %c0_16 = arith.constant 0 : index
    %c0_17 = arith.constant 0 : index
    %17 = vector.load %arg5[%c0_16, %c0_17] : memref<256x768xbf16, #tpu.memory_space<vmem>>, vector<256x768xbf16>
    %cst_18 = arith.constant dense<0.000000e+00> : vector<1x768xf32>
    %18 = tpu.matmul %16, %17, %cst_18 {dimension_numbers = #tpu.dot_dimension_numbers<[1], [0], [0], [1], [0, 0, 1, 1], [], []>} : vector<1x256xbf16>, vector<256x768xbf16>, vector<1x768xf32> -> vector<1x768xf32>
    %19 = arith.addf %18, %5 : vector<1x768xf32>
    %20 = vector.extract_strided_slice %15 {offsets = [0, 0], sizes = [1, 256], strides = [1, 1]} : vector<1x768xf32> to vector<1x256xf32>
    %21 = vector.extract_strided_slice %19 {offsets = [0, 0], sizes = [1, 256], strides = [1, 1]} : vector<1x768xf32> to vector<1x256xf32>
    %22 = arith.addf %20, %21 : vector<1x256xf32>
    %23 = arith.negf %22 : vector<1x256xf32>
    %24 = math.exp %23 : vector<1x256xf32>
    %cst_19 = arith.constant 1.000000e+00 : f32
    %25 = vector.broadcast %cst_19 : f32 to vector<1x256xf32>
    %26 = arith.addf %25, %24 : vector<1x256xf32>
    %27 = arith.divf %25, %26 : vector<1x256xf32>
    %28 = vector.extract_strided_slice %15 {offsets = [0, 256], sizes = [1, 256], strides = [1, 1]} : vector<1x768xf32> to vector<1x256xf32>
    %29 = vector.extract_strided_slice %19 {offsets = [0, 256], sizes = [1, 256], strides = [1, 1]} : vector<1x768xf32> to vector<1x256xf32>
    %30 = arith.addf %28, %29 : vector<1x256xf32>
    %31 = arith.negf %30 : vector<1x256xf32>
    %32 = math.exp %31 : vector<1x256xf32>
    %cst_20 = arith.constant 1.000000e+00 : f32
    %33 = vector.broadcast %cst_20 : f32 to vector<1x256xf32>
    %34 = arith.addf %33, %32 : vector<1x256xf32>
    %35 = arith.divf %33, %34 : vector<1x256xf32>
    %36 = vector.extract_strided_slice %15 {offsets = [0, 512], sizes = [1, 256], strides = [1, 1]} : vector<1x768xf32> to vector<1x256xf32>
    %37 = vector.extract_strided_slice %19 {offsets = [0, 512], sizes = [1, 256], strides = [1, 1]} : vector<1x768xf32> to vector<1x256xf32>
    %38 = arith.mulf %27, %37 : vector<1x256xf32>
    %39 = arith.addf %36, %38 : vector<1x256xf32>
    %40 = math.tanh %39 : vector<1x256xf32>
    %cst_21 = arith.constant 1.000000e+00 : f32
    %41 = vector.broadcast %cst_21 : f32 to vector<1x256xf32>
    %42 = arith.subf %41, %35 : vector<1x256xf32>
    %43 = arith.mulf %42, %40 : vector<1x256xf32>
    %44 = arith.mulf %35, %1 : vector<1x256xf32>
    %45 = arith.addf %43, %44 : vector<1x256xf32>
    %46 = arith.mulf %45, %3 : vector<1x256xf32>
    %c1_i32 = arith.constant 1 : i32
    %47 = arith.truncf %46 : vector<1x256xf32> to vector<1x256xbf16>
    %c0_22 = arith.constant 0 : index
    %c0_23 = arith.constant 0 : index
    %c0_24 = arith.constant 0 : index
    %48 = vector.load %arg1[%c0_22, %c0_23, %c0_24] : memref<1x256x256xbf16, #tpu.memory_space<vmem>>, vector<1x256x256xbf16>
    %49 = vector.shape_cast %48 : vector<1x256x256xbf16> to vector<256x256xbf16>
    %cst_25 = arith.constant dense<0.000000e+00> : vector<1x256xf32>
    %50 = tpu.matmul %47, %49, %cst_25 {dimension_numbers = #tpu.dot_dimension_numbers<[1], [0], [0], [1], [0, 0, 1, 1], [], []>} : vector<1x256xbf16>, vector<256x256xbf16>, vector<1x256xf32> -> vector<1x256xf32>
    %cst_26 = arith.constant 1.562500e-02 : f32
    %51 = vector.broadcast %cst_26 : f32 to vector<1x256xf32>
    %52 = arith.mulf %50, %51 : vector<1x256xf32>
    %53 = arith.truncf %52 : vector<1x256xf32> to vector<1x256xbf16>
    %c0_27 = arith.constant 0 : index
    %c0_28 = arith.constant 0 : index
    %54 = vector.load %arg4[%c0_27, %c0_28] : memref<256x768xbf16, #tpu.memory_space<vmem>>, vector<256x768xbf16>
    %cst_29 = arith.constant dense<0.000000e+00> : vector<1x768xf32>
    %55 = tpu.matmul %53, %54, %cst_29 {dimension_numbers = #tpu.dot_dimension_numbers<[1], [0], [0], [1], [0, 0, 1, 1], [], []>} : vector<1x256xbf16>, vector<256x768xbf16>, vector<1x768xf32> -> vector<1x768xf32>
    %56 = arith.addf %55, %4 : vector<1x768xf32>
    %57 = arith.truncf %46 : vector<1x256xf32> to vector<1x256xbf16>
    %c0_30 = arith.constant 0 : index
    %c0_31 = arith.constant 0 : index
    %58 = vector.load %arg5[%c0_30, %c0_31] : memref<256x768xbf16, #tpu.memory_space<vmem>>, vector<256x768xbf16>
    %cst_32 = arith.constant dense<0.000000e+00> : vector<1x768xf32>
    %59 = tpu.matmul %57, %58, %cst_32 {dimension_numbers = #tpu.dot_dimension_numbers<[1], [0], [0], [1], [0, 0, 1, 1], [], []>} : vector<1x256xbf16>, vector<256x768xbf16>, vector<1x768xf32> -> vector<1x768xf32>
    %60 = arith.addf %59, %5 : vector<1x768xf32>
    %61 = vector.extract_strided_slice %56 {offsets = [0, 0], sizes = [1, 256], strides = [1, 1]} : vector<1x768xf32> to vector<1x256xf32>
    %62 = vector.extract_strided_slice %60 {offsets = [0, 0], sizes = [1, 256], strides = [1, 1]} : vector<1x768xf32> to vector<1x256xf32>
    %63 = arith.addf %61, %62 : vector<1x256xf32>
    %64 = arith.negf %63 : vector<1x256xf32>
    %65 = math.exp %64 : vector<1x256xf32>
    %cst_33 = arith.constant 1.000000e+00 : f32
    %66 = vector.broadcast %cst_33 : f32 to vector<1x256xf32>
    %67 = arith.addf %66, %65 : vector<1x256xf32>
    %68 = arith.divf %66, %67 : vector<1x256xf32>
    %69 = vector.extract_strided_slice %56 {offsets = [0, 256], sizes = [1, 256], strides = [1, 1]} : vector<1x768xf32> to vector<1x256xf32>
    %70 = vector.extract_strided_slice %60 {offsets = [0, 256], sizes = [1, 256], strides = [1, 1]} : vector<1x768xf32> to vector<1x256xf32>
    %71 = arith.addf %69, %70 : vector<1x256xf32>
    %72 = arith.negf %71 : vector<1x256xf32>
    %73 = math.exp %72 : vector<1x256xf32>
    %cst_34 = arith.constant 1.000000e+00 : f32
    %74 = vector.broadcast %cst_34 : f32 to vector<1x256xf32>
    %75 = arith.addf %74, %73 : vector<1x256xf32>
    %76 = arith.divf %74, %75 : vector<1x256xf32>
    %77 = vector.extract_strided_slice %56 {offsets = [0, 512], sizes = [1, 256], strides = [1, 1]} : vector<1x768xf32> to vector<1x256xf32>
    %78 = vector.extract_strided_slice %60 {offsets = [0, 512], sizes = [1, 256], strides = [1, 1]} : vector<1x768xf32> to vector<1x256xf32>
    %79 = arith.mulf %68, %78 : vector<1x256xf32>
    %80 = arith.addf %77, %79 : vector<1x256xf32>
    %81 = math.tanh %80 : vector<1x256xf32>
    %cst_35 = arith.constant 1.000000e+00 : f32
    %82 = vector.broadcast %cst_35 : f32 to vector<1x256xf32>
    %83 = arith.subf %82, %76 : vector<1x256xf32>
    %84 = arith.mulf %83, %81 : vector<1x256xf32>
    %85 = arith.mulf %76, %46 : vector<1x256xf32>
    %86 = arith.addf %84, %85 : vector<1x256xf32>
    %87 = arith.mulf %86, %3 : vector<1x256xf32>
    %c2_i32 = arith.constant 2 : i32
    %88 = arith.truncf %87 : vector<1x256xf32> to vector<1x256xbf16>
    %c0_36 = arith.constant 0 : index
    %c0_37 = arith.constant 0 : index
    %c0_38 = arith.constant 0 : index
    %89 = vector.load %arg1[%c0_36, %c0_37, %c0_38] : memref<1x256x256xbf16, #tpu.memory_space<vmem>>, vector<1x256x256xbf16>
    %90 = vector.shape_cast %89 : vector<1x256x256xbf16> to vector<256x256xbf16>
    %cst_39 = arith.constant dense<0.000000e+00> : vector<1x256xf32>
    %91 = tpu.matmul %88, %90, %cst_39 {dimension_numbers = #tpu.dot_dimension_numbers<[1], [0], [0], [1], [0, 0, 1, 1], [], []>} : vector<1x256xbf16>, vector<256x256xbf16>, vector<1x256xf32> -> vector<1x256xf32>
    %cst_40 = arith.constant 1.562500e-02 : f32
    %92 = vector.broadcast %cst_40 : f32 to vector<1x256xf32>
    %93 = arith.mulf %91, %92 : vector<1x256xf32>
    %94 = arith.truncf %93 : vector<1x256xf32> to vector<1x256xbf16>
    %c0_41 = arith.constant 0 : index
    %c0_42 = arith.constant 0 : index
    %95 = vector.load %arg4[%c0_41, %c0_42] : memref<256x768xbf16, #tpu.memory_space<vmem>>, vector<256x768xbf16>
    %cst_43 = arith.constant dense<0.000000e+00> : vector<1x768xf32>
    %96 = tpu.matmul %94, %95, %cst_43 {dimension_numbers = #tpu.dot_dimension_numbers<[1], [0], [0], [1], [0, 0, 1, 1], [], []>} : vector<1x256xbf16>, vector<256x768xbf16>, vector<1x768xf32> -> vector<1x768xf32>
    %97 = arith.addf %96, %4 : vector<1x768xf32>
    %98 = arith.truncf %87 : vector<1x256xf32> to vector<1x256xbf16>
    %c0_44 = arith.constant 0 : index
    %c0_45 = arith.constant 0 : index
    %99 = vector.load %arg5[%c0_44, %c0_45] : memref<256x768xbf16, #tpu.memory_space<vmem>>, vector<256x768xbf16>
    %cst_46 = arith.constant dense<0.000000e+00> : vector<1x768xf32>
    %100 = tpu.matmul %98, %99, %cst_46 {dimension_numbers = #tpu.dot_dimension_numbers<[1], [0], [0], [1], [0, 0, 1, 1], [], []>} : vector<1x256xbf16>, vector<256x768xbf16>, vector<1x768xf32> -> vector<1x768xf32>
    %101 = arith.addf %100, %5 : vector<1x768xf32>
    %102 = vector.extract_strided_slice %97 {offsets = [0, 0], sizes = [1, 256], strides = [1, 1]} : vector<1x768xf32> to vector<1x256xf32>
    %103 = vector.extract_strided_slice %101 {offsets = [0, 0], sizes = [1, 256], strides = [1, 1]} : vector<1x768xf32> to vector<1x256xf32>
    %104 = arith.addf %102, %103 : vector<1x256xf32>
    %105 = arith.negf %104 : vector<1x256xf32>
    %106 = math.exp %105 : vector<1x256xf32>
    %cst_47 = arith.constant 1.000000e+00 : f32
    %107 = vector.broadcast %cst_47 : f32 to vector<1x256xf32>
    %108 = arith.addf %107, %106 : vector<1x256xf32>
    %109 = arith.divf %107, %108 : vector<1x256xf32>
    %110 = vector.extract_strided_slice %97 {offsets = [0, 256], sizes = [1, 256], strides = [1, 1]} : vector<1x768xf32> to vector<1x256xf32>
    %111 = vector.extract_strided_slice %101 {offsets = [0, 256], sizes = [1, 256], strides = [1, 1]} : vector<1x768xf32> to vector<1x256xf32>
    %112 = arith.addf %110, %111 : vector<1x256xf32>
    %113 = arith.negf %112 : vector<1x256xf32>
    %114 = math.exp %113 : vector<1x256xf32>
    %cst_48 = arith.constant 1.000000e+00 : f32
    %115 = vector.broadcast %cst_48 : f32 to vector<1x256xf32>
    %116 = arith.addf %115, %114 : vector<1x256xf32>
    %117 = arith.divf %115, %116 : vector<1x256xf32>
    %118 = vector.extract_strided_slice %97 {offsets = [0, 512], sizes = [1, 256], strides = [1, 1]} : vector<1x768xf32> to vector<1x256xf32>
    %119 = vector.extract_strided_slice %101 {offsets = [0, 512], sizes = [1, 256], strides = [1, 1]} : vector<1x768xf32> to vector<1x256xf32>
    %120 = arith.mulf %109, %119 : vector<1x256xf32>
    %121 = arith.addf %118, %120 : vector<1x256xf32>
    %122 = math.tanh %121 : vector<1x256xf32>
    %cst_49 = arith.constant 1.000000e+00 : f32
    %123 = vector.broadcast %cst_49 : f32 to vector<1x256xf32>
    %124 = arith.subf %123, %117 : vector<1x256xf32>
    %125 = arith.mulf %124, %122 : vector<1x256xf32>
    %126 = arith.mulf %117, %87 : vector<1x256xf32>
    %127 = arith.addf %125, %126 : vector<1x256xf32>
    %128 = arith.mulf %127, %3 : vector<1x256xf32>
    %c0_50 = arith.constant 0 : index
    %c0_51 = arith.constant 0 : index
    %c0_52 = arith.constant 0 : index
    %129 = vector.load %arg8[%c0_50, %c0_51, %c0_52] : memref<1x1x256xf32, #tpu.memory_space<vmem>>, vector<1x1x256xf32>
    %130 = vector.shape_cast %129 : vector<1x1x256xf32> to vector<1x256xf32>
    %131 = vector.shape_cast %128 : vector<1x256xf32> to vector<1x1x256xf32>
    tpu.vector_store %arg8[%c0_50, %c0_51, %c0_52], %131 {strides = array<i32>} : memref<1x1x256xf32, #tpu.memory_space<vmem>>, vector<1x1x256xf32>,
    return
  }
  func.func @transform_0(%arg0: i32) -> (i32, i32, i32) {
    %c0_i32 = arith.constant 0 : i32
    %c0_i32_0 = arith.constant 0 : i32
    %c0_i32_1 = arith.constant 0 : i32
    return %arg0, %c0_i32, %c0_i32_0 : i32, i32, i32
  }
  func.func @transform_1(%arg0: i32) -> (i32, i32, i32) {
    %c0_i32 = arith.constant 0 : i32
    %c0_i32_0 = arith.constant 0 : i32
    %c0_i32_1 = arith.constant 0 : i32
    return %arg0, %c0_i32, %c0_i32_0 : i32, i32, i32
  }
  func.func @transform_2(%arg0: i32) -> (i32, i32, i32) {
    %c0_i32 = arith.constant 0 : i32
    %c0_i32_0 = arith.constant 0 : i32
    %c0_i32_1 = arith.constant 0 : i32
    return %arg0, %c0_i32, %c0_i32_0 : i32, i32, i32
  }
  func.func @transform_3(%arg0: i32) -> (i32, i32) {
    %c0_i32 = arith.constant 0 : i32
    %c0_i32_0 = arith.constant 0 : i32
    %c0_i32_1 = arith.constant 0 : i32
    return %c0_i32, %c0_i32_0 : i32, i32
  }
  func.func @transform_4(%arg0: i32) -> (i32, i32) {
    %c0_i32 = arith.constant 0 : i32
    %c0_i32_0 = arith.constant 0 : i32
    %c0_i32_1 = arith.constant 0 : i32
    return %c0_i32, %c0_i32_0 : i32, i32
  }
  func.func @transform_5(%arg0: i32) -> (i32, i32) {
    %c0_i32 = arith.constant 0 : i32
    %c0_i32_0 = arith.constant 0 : i32
    %c0_i32_1 = arith.constant 0 : i32
    return %c0_i32, %c0_i32_0 : i32, i32
  }
  func.func @transform_6(%arg0: i32) -> (i32, i32) {
    %c0_i32 = arith.constant 0 : i32
    %c0_i32_0 = arith.constant 0 : i32
    %c0_i32_1 = arith.constant 0 : i32
    return %c0_i32, %c0_i32_0 : i32, i32
  }
  func.func @transform_7(%arg0: i32) -> (i32, i32, i32) {
    %c0_i32 = arith.constant 0 : i32
    %c0_i32_0 = arith.constant 0 : i32
    %c0_i32_1 = arith.constant 0 : i32
    return %arg0, %c0_i32, %c0_i32_0 : i32, i32, i32
  }
}

</mosaic_0001>

<llo_original>
// kernel: tpu_custom_call.1
$region0: #{tpu_custom_call.1}
  #allocation0 [shape = 'u32[]', space=smem, size = 0x4, offset = 0x4, fixed_abs, tag = 'smem constant byte address 0x4 - core index']
  #allocation1 [shape = 'u32[144,128]{1,0:T(1,128)}', space=vmem, size = 0x12000, scoped, tag = 'internal scratch']
  %s0 = inlined_call_operand.hbm [shape: bf16[2,256,256], index: 0, kind: input, shape index: {}]
  %s1 = inlined_call_operand.hbm [shape: f32[2,1,256], index: 1, kind: input, shape index: {}]
  %s2 = inlined_call_operand.hbm [shape: f32[2,1,256], index: 2, kind: input, shape index: {}]
  %s3 = inlined_call_operand.hbm [shape: bf16[256,768], index: 3, kind: input, shape index: {}]
  %s4 = inlined_call_operand.hbm [shape: bf16[256,768], index: 4, kind: input, shape index: {}]
  %s5 = inlined_call_operand.vmem [shape: f32[1,768], index: 5, kind: input, shape index: {}]
  %s6 = inlined_call_operand.hbm [shape: f32[1,768], index: 6, kind: input, shape index: {}]
  %s7 = inlined_call_operand.hbm [shape: f32[2,1,256], index: 7, kind: output, shape index: {}]
  %s8 = sld [smem:[#allocation0]]
  $region85: #{tpu_custom_call.1} parent=0
    _
  %s10 = ssub.s32 1, %s8
  %s11 = scalar_select 0, %s10, %s8
  $region1: #{tpu_custom_call.1} parent=0
    #allocation2 [shape = 'u8[262144]{0}', space=vmem, size = 0x40000, scoped, tag = 'input window, operand 0']
    #allocation3 [shape = 's32[2]{0}', space=sflag, size = 0x8, scoped, tag = 'scoped memory for tpu_custom_call.1']
    #allocation4 [shape = 's32[2]{0}', space=sflag, size = 0x8, scoped, tag = 'scoped memory for tpu_custom_call.1']
    #allocation5 [shape = 'u8[2048]{0}', space=vmem, size = 0x800, scoped, tag = 'input window, operand 1']
    #allocation6 [shape = 's32[2]{0}', space=sflag, size = 0x8, scoped, tag = 'scoped memory for tpu_custom_call.1']
    #allocation7 [shape = 'u8[2048]{0}', space=vmem, size = 0x800, scoped, tag = 'input window, operand 2']
    #allocation8 [shape = 'u8[393216]{0}', space=vmem, size = 0x60000, scoped, tag = 'input window, operand 3, single buffered']
    #allocation9 [shape = 's32[1]{0}', space=sflag, size = 0x4, scoped, tag = 'scoped memory for tpu_custom_call.1']
    #allocation10 [shape = 'u8[393216]{0}', space=vmem, size = 0x60000, scoped, tag = 'input window, operand 4, single buffered']
    #allocation11 [shape = 'u8[3072]{0}', space=vmem, size = 0xc00, scoped, tag = 'input window, operand 6, single buffered']
    #allocation12 [shape = 's32[1]{0}', space=sflag, size = 0x4, scoped, tag = 'scoped memory for tpu_custom_call.1']
    #allocation13 [shape = 'u8[2048]{0}', space=vmem, size = 0x800, scoped, tag = 'output window, operand 0']
    %12 = vsyncpa [#allocation3], 0
    %s13 = scalar_lea.sflag [#allocation3], 1
    %14 = vsyncpa %s13, 0
    %15 = vsyncpa [#allocation6], 0
    %s16 = scalar_lea.sflag [#allocation6], 1
    %17 = vsyncpa %s16, 0
    %18 = vsyncpa [#allocation9], 0
    %19 = vsyncpa [#allocation12], 0
    %20 = vsyncpa [#allocation4], 0
    %s21 = scalar_lea.sflag [#allocation4], 1
    %22 = vsyncpa %s21, 0
    loop: start=0, step=1, limit=4
    $region2: #{tpu_custom_call.1} parent=1 // loop_pre_header
      _
    $region3: #{tpu_custom_call.1} parent=1 // loop_header
      %s24 = sphi 0, %s28
      %p25 = scmp.ge.s32.totalorder %s24, 4
      %s34 = sphi 0, %s36
      %s37 = sphi 0, %s34
      %s38 = sphi 0, %s37
      %s54 = sphi 0, %s38
      %s60 = sphi 0, %s62
      %s63 = sphi 0, %s60
      %s64 = sphi 0, %s63
      %s80 = sphi 0, %s64
      %s86 = sphi 0, %s88
      %s89 = sphi 0, %s86
      %s90 = sphi 0, %s89
      %s106 = sphi 0, %s90
      %s110 = sphi 0, %s110
      %s112 = sphi 0, %s110
      %s113 = sphi 0, %s112
      %s127 = sphi 0, %s113
      %s131 = sphi 0, %s131
      %s133 = sphi 0, %s131
      %s134 = sphi 0, %s133
      %s148 = sphi 0, %s134
      %s152 = sphi 0, %s152
      %s154 = sphi 0, %s152
      %s155 = sphi 0, %s154
      %s169 = sphi 0, %s155
      %s173 = sphi 0, %s173
      %s175 = sphi 0, %s173
      %s176 = sphi 0, %s175
      %s190 = sphi 0, %s176
      %s196 = sphi 0, %s198
      %s199 = sphi 0, %s196
      %s200 = sphi 0, %s199
      %s216 = sphi 0, %s200
    $region4: #{tpu_custom_call.1} parent=1 // loop_header_branch
      %27 = sbr.rel (%p25) target = $region8
    $region5: #{tpu_custom_call.1} parent=1 // loop_body
      %s29 = ssub.s32 %s24, 1
      %s30 = ssub.s32 %s24, 2
      %s31 = sadd.s32 %s24, 1
      %s32 = ssub.s32 %s24, %s31
      %p33 = scmp.eq.s32.totalorder %s32, 0
      %s35 = sadd.s32 %s34, 1
      %s36 = scalar_select %p33, %s34, %s35
      %p39 = pneg %p33
      %p40 = scmp.eq.s32.totalorder %s24, 1
      %p41 = por %p39, %p40
      %p42 = scmp.ne.s32.totalorder %s34, %s37
      %p43 = scmp.eq.s32.totalorder %s24, 0
      %p44 = por %p42, %p43
      %p45 = scmp.ne.s32.totalorder %s34, %s37
      %p46 = scmp.eq.s32.totalorder %s29, 1
      %p47 = por %p45, %p46
      %p48 = scmp.ne.s32.totalorder %s37, %s38
      %p49 = scmp.eq.s32.totalorder %s29, 0
      %p50 = por %p48, %p49
      %p51 = scmp.ne.s32.totalorder %s37, %s38
      %p52 = scmp.eq.s32.totalorder %s30, 1
      %p53 = por %p51, %p52
      %p55 = scmp.ne.s32.totalorder %s38, %s54
      %p56 = scmp.eq.s32.totalorder %s30, 0
      %p57 = por %p55, %p56
      %s58 = ssub.s32 %s24, %s31
      %p59 = scmp.eq.s32.totalorder %s58, 0
      %s61 = sadd.s32 %s60, 1
      %s62 = scalar_select %p59, %s60, %s61
      %p65 = pneg %p59
      %p66 = scmp.eq.s32.totalorder %s24, 1
      %p67 = por %p65, %p66
      %p68 = scmp.ne.s32.totalorder %s60, %s63
      %p69 = scmp.eq.s32.totalorder %s24, 0
      %p70 = por %p68, %p69
      %p71 = scmp.ne.s32.totalorder %s60, %s63
      %p72 = scmp.eq.s32.totalorder %s29, 1
      %p73 = por %p71, %p72
      %p74 = scmp.ne.s32.totalorder %s63, %s64
      %p75 = scmp.eq.s32.totalorder %s29, 0
      %p76 = por %p74, %p75
      %p77 = scmp.ne.s32.totalorder %s63, %s64
      %p78 = scmp.eq.s32.totalorder %s30, 1
      %p79 = por %p77, %p78
      %p81 = scmp.ne.s32.totalorder %s64, %s80
      %p82 = scmp.eq.s32.totalorder %s30, 0
      %p83 = por %p81, %p82
      %s84 = ssub.s32 %s24, %s31
      %p85 = scmp.eq.s32.totalorder %s84, 0
      %s87 = sadd.s32 %s86, 1
      %s88 = scalar_select %p85, %s86, %s87
      %p91 = pneg %p85
      %p92 = scmp.eq.s32.totalorder %s24, 1
      %p93 = por %p91, %p92
      %p94 = scmp.ne.s32.totalorder %s86, %s89
      %p95 = scmp.eq.s32.totalorder %s24, 0
      %p96 = por %p94, %p95
      %p97 = scmp.ne.s32.totalorder %s86, %s89
      %p98 = scmp.eq.s32.totalorder %s29, 1
      %p99 = por %p97, %p98
      %p100 = scmp.ne.s32.totalorder %s89, %s90
      %p101 = scmp.eq.s32.totalorder %s29, 0
      %p102 = por %p100, %p101
      %p103 = scmp.ne.s32.totalorder %s89, %s90
      %p104 = scmp.eq.s32.totalorder %s30, 1
      %p105 = por %p103, %p104
      %p107 = scmp.ne.s32.totalorder %s90, %s106
      %p108 = scmp.eq.s32.totalorder %s30, 0
      %p109 = por %p107, %p108
      %s111 = sadd.s32 %s110, 1
      %p114 = scmp.eq.s32.totalorder %s24, 1
      %p115 = scmp.ne.s32.totalorder %s110, %s112
      %p116 = scmp.eq.s32.totalorder %s24, 0
      %p117 = por %p115, %p116
      %p118 = scmp.ne.s32.totalorder %s110, %s112
      %p119 = scmp.eq.s32.totalorder %s29, 1
      %p120 = por %p118, %p119
      %p121 = scmp.ne.s32.totalorder %s112, %s113
      %p122 = scmp.eq.s32.totalorder %s29, 0
      %p123 = por %p121, %p122
      %p124 = scmp.ne.s32.totalorder %s112, %s113
      %p125 = scmp.eq.s32.totalorder %s30, 1
      %p126 = por %p124, %p125
      %p128 = scmp.ne.s32.totalorder %s113, %s127
      %p129 = scmp.eq.s32.totalorder %s30, 0
      %p130 = por %p128, %p129
      %s132 = sadd.s32 %s131, 1
      %p135 = scmp.eq.s32.totalorder %s24, 1
      %p136 = scmp.ne.s32.totalorder %s131, %s133
      %p137 = scmp.eq.s32.totalorder %s24, 0
      %p138 = por %p136, %p137
      %p139 = scmp.ne.s32.totalorder %s131, %s133
      %p140 = scmp.eq.s32.totalorder %s29, 1
      %p141 = por %p139, %p140
      %p142 = scmp.ne.s32.totalorder %s133, %s134
      %p143 = scmp.eq.s32.totalorder %s29, 0
      %p144 = por %p142, %p143
      %p145 = scmp.ne.s32.totalorder %s133, %s134
      %p146 = scmp.eq.s32.totalorder %s30, 1
      %p147 = por %p145, %p146
      %p149 = scmp.ne.s32.totalorder %s134, %s148
      %p150 = scmp.eq.s32.totalorder %s30, 0
      %p151 = por %p149, %p150
      %s153 = sadd.s32 %s152, 1
      %p156 = scmp.eq.s32.totalorder %s24, 1
      %p157 = scmp.ne.s32.totalorder %s152, %s154
      %p158 = scmp.eq.s32.totalorder %s24, 0
      %p159 = por %p157, %p158
      %p160 = scmp.ne.s32.totalorder %s152, %s154
      %p161 = scmp.eq.s32.totalorder %s29, 1
      %p162 = por %p160, %p161
      %p163 = scmp.ne.s32.totalorder %s154, %s155
      %p164 = scmp.eq.s32.totalorder %s29, 0
      %p165 = por %p163, %p164
      %p166 = scmp.ne.s32.totalorder %s154, %s155
      %p167 = scmp.eq.s32.totalorder %s30, 1
      %p168 = por %p166, %p167
      %p170 = scmp.ne.s32.totalorder %s155, %s169
      %p171 = scmp.eq.s32.totalorder %s30, 0
      %p172 = por %p170, %p171
      %s174 = sadd.s32 %s173, 1
      %p177 = scmp.eq.s32.totalorder %s24, 1
      %p178 = scmp.ne.s32.totalorder %s173, %s175
      %p179 = scmp.eq.s32.totalorder %s24, 0
      %p180 = por %p178, %p179
      %p181 = scmp.ne.s32.totalorder %s173, %s175
      %p182 = scmp.eq.s32.totalorder %s29, 1
      %p183 = por %p181, %p182
      %p184 = scmp.ne.s32.totalorder %s175, %s176
      %p185 = scmp.eq.s32.totalorder %s29, 0
      %p186 = por %p184, %p185
      %p187 = scmp.ne.s32.totalorder %s175, %s176
      %p188 = scmp.eq.s32.totalorder %s30, 1
      %p189 = por %p187, %p188
      %p191 = scmp.ne.s32.totalorder %s176, %s190
      %p192 = scmp.eq.s32.totalorder %s30, 0
      %p193 = por %p191, %p192
      %s194 = ssub.s32 %s24, %s31
      %p195 = scmp.eq.s32.totalorder %s194, 0
      %s197 = sadd.s32 %s196, 1
      %s198 = scalar_select %p195, %s196, %s197
      %p201 = pneg %p195
      %p202 = scmp.eq.s32.totalorder %s24, 1
      %p203 = por %p201, %p202
      %p204 = scmp.ne.s32.totalorder %s196, %s199
      %p205 = scmp.eq.s32.totalorder %s24, 0
      %p206 = por %p204, %p205
      %p207 = scmp.ne.s32.totalorder %s196, %s199
      %p208 = scmp.eq.s32.totalorder %s29, 1
      %p209 = por %p207, %p208
      %p210 = scmp.ne.s32.totalorder %s199, %s200
      %p211 = scmp.eq.s32.totalorder %s29, 0
      %p212 = por %p210, %p211
      %p213 = scmp.ne.s32.totalorder %s199, %s200
      %p214 = scmp.eq.s32.totalorder %s30, 1
      %p215 = por %p213, %p214
      %p217 = scmp.ne.s32.totalorder %s200, %s216
      %p218 = scmp.eq.s32.totalorder %s30, 0
      %p219 = por %p217, %p218
      %p220 = scmp.le.s32.totalorder 1, %s24
      %p221 = scmp.lt.s32.totalorder %s24, 3
      %p222 = pnand %p220, %p221
      %p223 = pneg %p222
      // Predicated region
      $region9: #{tpu_custom_call.1} parent=5 // pred_check
        _
      $region10: #{tpu_custom_call.1} parent=5 // pred_check_branch
        %225 = sbr.rel (%p222) target = $region12
      $region11: #{tpu_custom_call.1} parent=5 // pred_region
        %s226 = ssub.s32 %s24, 1
        // Predicated region
        $region13: #{tpu_custom_call.1} parent=11 // pred_check
          %p227 = pneg %p123
        $region14: #{tpu_custom_call.1} parent=11 // pred_check_branch
          %229 = sbr.rel (%p227) target = $region16
        $region15: #{tpu_custom_call.1} parent=11 // pred_region
          %s231 = ssub.s32 12288, 12288
          %232 = vsyncadd [#allocation9], %s231
          %s233 = sshll.u32 [#allocation8], 4
          %s234 = int_to_ptr.vmem [resolvable:$true] %s233
          %239 = dma.hbm_to_vmem [thread:$0]  %s3, 12288, %s234, [#allocation9], 384, 384, 24
        $region16: #{tpu_custom_call.1} parent=11 // pred_fallthru
          _
        // Predicated region
        $region17: #{tpu_custom_call.1} parent=11 // pred_check
          %p240 = pneg %p144
        $region18: #{tpu_custom_call.1} parent=11 // pred_check_branch
          %242 = sbr.rel (%p240) target = $region20
        $region19: #{tpu_custom_call.1} parent=11 // pred_region
          %s244 = ssub.s32 12288, 12288
          %245 = vsyncadd [#allocation9], %s244
          %s246 = sshll.u32 [#allocation10], 4
          %s247 = int_to_ptr.vmem [resolvable:$true] %s246
          %252 = dma.hbm_to_vmem [thread:$0]  %s4, 12288, %s247, [#allocation9], 384, 384, 24
        $region20: #{tpu_custom_call.1} parent=11 // pred_fallthru
          _
        // Predicated region
        $region21: #{tpu_custom_call.1} parent=11 // pred_check
          %p253 = pneg %p165
        $region22: #{tpu_custom_call.1} parent=11 // pred_check_branch
          %255 = sbr.rel (%p253) target = $region24
        $region23: #{tpu_custom_call.1} parent=11 // pred_region
          _
        $region24: #{tpu_custom_call.1} parent=11 // pred_fallthru
          _
        // Predicated region
        $region25: #{tpu_custom_call.1} parent=11 // pred_check
          %p256 = pneg %p186
        $region26: #{tpu_custom_call.1} parent=11 // pred_check_branch
          %258 = sbr.rel (%p256) target = $region28
        $region27: #{tpu_custom_call.1} parent=11 // pred_region
          %s260 = ssub.s32 96, 96
          %261 = vsyncadd [#allocation12], %s260
          %s263 = sshll.u32 [#allocation11], 4
          %s264 = int_to_ptr.vmem [resolvable:$true] %s263
          %266 = dma.hbm_to_vmem [thread:$0]  %s6, 96, %s264, [#allocation12]
        $region28: #{tpu_custom_call.1} parent=11 // pred_fallthru
          _
      $region12: #{tpu_custom_call.1} parent=5 // pred_fallthru
        _
      %p267 = scmp.lt.s32.totalorder %s24, 2
      // Predicated region
      $region29: #{tpu_custom_call.1} parent=5 // pred_check
        %p268 = pneg %p267
      $region30: #{tpu_custom_call.1} parent=5 // pred_check_branch
        %270 = sbr.rel (%p268) target = $region32
      $region31: #{tpu_custom_call.1} parent=5 // pred_region
        // Predicated region
        $region33: #{tpu_custom_call.1} parent=31 // pred_check
          %p271 = pneg %p44
        $region34: #{tpu_custom_call.1} parent=31 // pred_check_branch
          %273 = sbr.rel (%p271) target = $region36
        $region35: #{tpu_custom_call.1} parent=31 // pred_region
          %s274 = sand.u32 %s34, 1
          %s275 = scalar_lea.sflag [#allocation3], %s274
          %s276 = sand.u32 %s34, 1
          %s277 = smul.addr %s276, 256
          %s278 = scalar_lea.vmem [#allocation2], %s277
          %s280 = ssub.s32 4096, 4096
          %281 = vsyncadd %s275, %s280
          %s282 = smul.addr %s24, 64
          %s283 = smul.addr %s282, 64
          %s284 = scalar_lea.hbm %s0, %s283
          %s285 = sshll.u32 %s278, 4
          %s286 = int_to_ptr.vmem [resolvable:$true] %s285
          %291 = dma.hbm_to_vmem [thread:$0]  %s284, 4096, %s286, %s275, 128, 128, 8
        $region36: #{tpu_custom_call.1} parent=31 // pred_fallthru
          _
        // Predicated region
        $region37: #{tpu_custom_call.1} parent=31 // pred_check
          %p292 = pneg %p70
        $region38: #{tpu_custom_call.1} parent=31 // pred_check_branch
          %294 = sbr.rel (%p292) target = $region40
        $region39: #{tpu_custom_call.1} parent=31 // pred_region
          %s295 = sand.u32 %s24, 1
          %s296 = scalar_lea.sflag [#allocation6], %s295
          %s297 = sand.u32 %s60, 1
          %s298 = smul.addr %s297, 2
          %s299 = scalar_lea.vmem [#allocation5], %s298
          %s301 = ssub.s32 32, 32
          %302 = vsyncadd %s296, %s301
          %s303 = smul.addr %s24, 2
          %s304 = smul.addr %s303, 16
          %s305 = scalar_lea.hbm %s1, %s304
          %s307 = sshll.u32 %s299, 4
          %s308 = int_to_ptr.vmem [resolvable:$true] %s307
          %310 = dma.hbm_to_vmem [thread:$0]  %s305, 32, %s308, %s296
        $region40: #{tpu_custom_call.1} parent=31 // pred_fallthru
          _
        // Predicated region
        $region41: #{tpu_custom_call.1} parent=31 // pred_check
          %p311 = pneg %p96
        $region42: #{tpu_custom_call.1} parent=31 // pred_check_branch
          %313 = sbr.rel (%p311) target = $region44
        $region43: #{tpu_custom_call.1} parent=31 // pred_region
          %s314 = sand.u32 %s24, 1
          %s315 = scalar_lea.sflag [#allocation6], %s314
          %s316 = sand.u32 %s86, 1
          %s317 = smul.addr %s316, 2
          %s318 = scalar_lea.vmem [#allocation7], %s317
          %s320 = ssub.s32 32, 32
          %321 = vsyncadd %s315, %s320
          %s322 = smul.addr %s24, 2
          %s323 = smul.addr %s322, 16
          %s324 = scalar_lea.hbm %s2, %s323
          %s326 = sshll.u32 %s318, 4
          %s327 = int_to_ptr.vmem [resolvable:$true] %s326
          %329 = dma.hbm_to_vmem [thread:$0]  %s324, 32, %s327, %s315
        $region44: #{tpu_custom_call.1} parent=31 // pred_fallthru
          _
      $region32: #{tpu_custom_call.1} parent=5 // pred_fallthru
        _
      %p330 = scmp.le.s32.totalorder 1, %s24
      %p331 = scmp.lt.s32.totalorder %s24, 3
      %p332 = pnand %p330, %p331
      %p333 = pneg %p332
      // Predicated region
      $region45: #{tpu_custom_call.1} parent=5 // pred_check
        _
      $region46: #{tpu_custom_call.1} parent=5 // pred_check_branch
        %335 = sbr.rel (%p332) target = $region48
      $region47: #{tpu_custom_call.1} parent=5 // pred_region
        %s336 = ssub.s32 %s24, 1
        %s337 = sand.u32 %s37, 1
        %s338 = scalar_lea.sflag [#allocation3], %s337
        %s339 = sand.u32 %s37, 1
        %s340 = smul.addr %s339, 256
        %s341 = scalar_lea.vmem [#allocation2], %s340
        // Predicated region
        $region49: #{tpu_custom_call.1} parent=47 // pred_check
          %p342 = pneg %p50
        $region50: #{tpu_custom_call.1} parent=47 // pred_check_branch
          %344 = sbr.rel (%p342) target = $region52
        $region51: #{tpu_custom_call.1} parent=47 // pred_region
          %345 = dma.done %s338, 4096
        $region52: #{tpu_custom_call.1} parent=47 // pred_fallthru
          _
        %s346 = sand.u32 %s29, 1
        %s347 = scalar_lea.sflag [#allocation6], %s346
        %s348 = sand.u32 %s63, 1
        %s349 = smul.addr %s348, 2
        %s350 = scalar_lea.vmem [#allocation5], %s349
        // Predicated region
        $region53: #{tpu_custom_call.1} parent=47 // pred_check
          %p351 = pneg %p76
        $region54: #{tpu_custom_call.1} parent=47 // pred_check_branch
          %353 = sbr.rel (%p351) target = $region56
        $region55: #{tpu_custom_call.1} parent=47 // pred_region
          %354 = dma.done %s347, 32
        $region56: #{tpu_custom_call.1} parent=47 // pred_fallthru
          _
        %s355 = sand.u32 %s29, 1
        %s356 = scalar_lea.sflag [#allocation6], %s355
        %s357 = sand.u32 %s89, 1
        %s358 = smul.addr %s357, 2
        %s359 = scalar_lea.vmem [#allocation7], %s358
        // Predicated region
        $region57: #{tpu_custom_call.1} parent=47 // pred_check
          %p360 = pneg %p102
        $region58: #{tpu_custom_call.1} parent=47 // pred_check_branch
          %362 = sbr.rel (%p360) target = $region60
        $region59: #{tpu_custom_call.1} parent=47 // pred_region
          %363 = dma.done %s356, 32
        $region60: #{tpu_custom_call.1} parent=47 // pred_fallthru
          _
        // Predicated region
        $region61: #{tpu_custom_call.1} parent=47 // pred_check
          %p364 = pneg %p123
        $region62: #{tpu_custom_call.1} parent=47 // pred_check_branch
          %366 = sbr.rel (%p364) target = $region64
        $region63: #{tpu_custom_call.1} parent=47 // pred_region
          %367 = dma.done [#allocation9], 12288
        $region64: #{tpu_custom_call.1} parent=47 // pred_fallthru
          _
        // Predicated region
        $region65: #{tpu_custom_call.1} parent=47 // pred_check
          %p368 = pneg %p144
        $region66: #{tpu_custom_call.1} parent=47 // pred_check_branch
          %370 = sbr.rel (%p368) target = $region68
        $region67: #{tpu_custom_call.1} parent=47 // pred_region
          %371 = dma.done [#allocation9], 12288
        $region68: #{tpu_custom_call.1} parent=47 // pred_fallthru
          _
        // Predicated region
        $region69: #{tpu_custom_call.1} parent=47 // pred_check
          %p372 = pneg %p186
        $region70: #{tpu_custom_call.1} parent=47 // pred_check_branch
          %374 = sbr.rel (%p372) target = $region72
        $region71: #{tpu_custom_call.1} parent=47 // pred_region
          %375 = dma.done [#allocation12], 96
        $region72: #{tpu_custom_call.1} parent=47 // pred_fallthru
          _
        %s376 = sand.u32 %s37, 1
        %s377 = scalar_lea.sflag [#allocation3], %s376
        %s378 = sand.u32 %s37, 1
        %s379 = smul.addr %s378, 256
        %s380 = scalar_lea.vmem [#allocation2], %s379
        %p381 = pneg %p50
        %p382 = pneg %p47
        %s383 = sand.u32 %s29, 1
        %s384 = scalar_lea.sflag [#allocation6], %s383
        %s385 = sand.u32 %s63, 1
        %s386 = smul.addr %s385, 2
        %s387 = scalar_lea.vmem [#allocation5], %s386
        %p388 = pneg %p76
        %p389 = pneg %p73
        %s390 = sand.u32 %s29, 1
        %s391 = scalar_lea.sflag [#allocation6], %s390
        %s392 = sand.u32 %s89, 1
        %s393 = smul.addr %s392, 2
        %s394 = scalar_lea.vmem [#allocation7], %s393
        %p395 = pneg %p102
        %p396 = pneg %p99
        %p397 = pneg %p123
        %p398 = pneg %p120
        %p399 = pneg %p144
        %p400 = pneg %p141
        %p401 = pneg %p165
        %p402 = pneg %p162
        %p403 = pneg %p186
        %p404 = pneg %p183
        %p405 = pneg %p212
        %p406 = pneg %p209
        %s407 = sand.u32 %s199, 1
        %s408 = scalar_lea.sflag [#allocation4], %s407
        %s409 = sand.u32 %s199, 1
        %s410 = smul.addr %s409, 2
        %s411 = scalar_lea.vmem [#allocation13], %s410
        %v412 = vld [vmem:[%s350] sm:$0x3]
        %v413 = vld [vmem:[%s359] sm:$0x3]
        %v414 = vld [vmem:[%s5] sm:$0x3f]
        %v415 = vld [vmem:[#allocation11] sm:$0x3f]
        %v417 = vlaneseq
        %v418 = vshrl.u32 %v417, 7
        %v419 = vsub.s32 0, %v418
        %v420 = vrot.slane %v412, %v419
        %v421 = vlaneseq
        %v422 = vshrl.u32 %v421, 7
        %v423 = vsub.s32 1, %v422
        %v424 = vrot.slane %v412, %v423
        %v427 = vpack.c.bf16 %v420, %v420
        %v428 = vpack.c.bf16 %v424, %v424
        %v429 = vld [vmem:[%s341] sm:$0xff]
        %v430 = vld [vmem:[%s341 + $0x8] sm:$0xff]
        %v431 = vld [vmem:[%s341 + $0x10] sm:$0xff]
        %v432 = vld [vmem:[%s341 + $0x18] sm:$0xff]
        %v433 = vld [vmem:[%s341 + $0x20] sm:$0xff]
        %v434 = vld [vmem:[%s341 + $0x28] sm:$0xff]
        %v435 = vld [vmem:[%s341 + $0x30] sm:$0xff]
        %v436 = vld [vmem:[%s341 + $0x38] sm:$0xff]
        %v437 = vld [vmem:[%s341 + $0x40] sm:$0xff]
        %v438 = vld [vmem:[%s341 + $0x48] sm:$0xff]
        %v439 = vld [vmem:[%s341 + $0x50] sm:$0xff]
        %v440 = vld [vmem:[%s341 + $0x58] sm:$0xff]
        %v441 = vld [vmem:[%s341 + $0x60] sm:$0xff]
        %v442 = vld [vmem:[%s341 + $0x68] sm:$0xff]
        %v443 = vld [vmem:[%s341 + $0x70] sm:$0xff]
        %v444 = vld [vmem:[%s341 + $0x78] sm:$0xff]
        %v445 = vld [vmem:[%s341 + $0x80] sm:$0xff]
        %v446 = vld [vmem:[%s341 + $0x88] sm:$0xff]
        %v447 = vld [vmem:[%s341 + $0x90] sm:$0xff]
        %v448 = vld [vmem:[%s341 + $0x98] sm:$0xff]
        %v449 = vld [vmem:[%s341 + $0xa0] sm:$0xff]
        %v450 = vld [vmem:[%s341 + $0xa8] sm:$0xff]
        %v451 = vld [vmem:[%s341 + $0xb0] sm:$0xff]
        %v452 = vld [vmem:[%s341 + $0xb8] sm:$0xff]
        %v453 = vld [vmem:[%s341 + $0xc0] sm:$0xff]
        %v454 = vld [vmem:[%s341 + $0xc8] sm:$0xff]
        %v455 = vld [vmem:[%s341 + $0xd0] sm:$0xff]
        %v456 = vld [vmem:[%s341 + $0xd8] sm:$0xff]
        %v457 = vld [vmem:[%s341 + $0xe0] sm:$0xff]
        %v458 = vld [vmem:[%s341 + $0xe8] sm:$0xff]
        %v459 = vld [vmem:[%s341 + $0xf0] sm:$0xff]
        %v460 = vld [vmem:[%s341 + $0xf8] sm:$0xff]
        %v493 = vunpack.c.l.b16 %v429
        %v494 = vunpack.c.h.b16 %v429
        %v495 = vunpack.c.l.b16 %v430
        %v496 = vunpack.c.h.b16 %v430
        %v497 = vunpack.c.l.b16 %v431
        %v498 = vunpack.c.h.b16 %v431
        %v499 = vunpack.c.l.b16 %v432
        %v500 = vunpack.c.h.b16 %v432
        %v501 = vunpack.c.l.b16 %v433
        %v502 = vunpack.c.h.b16 %v433
        %v503 = vunpack.c.l.b16 %v434
        %v504 = vunpack.c.h.b16 %v434
        %v505 = vunpack.c.l.b16 %v435
        %v506 = vunpack.c.h.b16 %v435
        %v507 = vunpack.c.l.b16 %v436
        %v508 = vunpack.c.h.b16 %v436
        %v509 = vunpack.c.l.b16 %v437
        %v510 = vunpack.c.h.b16 %v437
        %v511 = vunpack.c.l.b16 %v438
        %v512 = vunpack.c.h.b16 %v438
        %v513 = vunpack.c.l.b16 %v439
        %v514 = vunpack.c.h.b16 %v439
        %v515 = vunpack.c.l.b16 %v440
        %v516 = vunpack.c.h.b16 %v440
        %v517 = vunpack.c.l.b16 %v441
        %v518 = vunpack.c.h.b16 %v441
        %v519 = vunpack.c.l.b16 %v442
        %v520 = vunpack.c.h.b16 %v442
        %v521 = vunpack.c.l.b16 %v443
        %v522 = vunpack.c.h.b16 %v443
        %v523 = vunpack.c.l.b16 %v444
        %v524 = vunpack.c.h.b16 %v444
        %v525 = vunpack.c.l.b16 %v445
        %v526 = vunpack.c.h.b16 %v445
        %v527 = vunpack.c.l.b16 %v446
        %v528 = vunpack.c.h.b16 %v446
        %v529 = vunpack.c.l.b16 %v447
        %v530 = vunpack.c.h.b16 %v447
        %v531 = vunpack.c.l.b16 %v448
        %v532 = vunpack.c.h.b16 %v448
        %v533 = vunpack.c.l.b16 %v449
        %v534 = vunpack.c.h.b16 %v449
        %v535 = vunpack.c.l.b16 %v450
        %v536 = vunpack.c.h.b16 %v450
        %v537 = vunpack.c.l.b16 %v451
        %v538 = vunpack.c.h.b16 %v451
        %v539 = vunpack.c.l.b16 %v452
        %v540 = vunpack.c.h.b16 %v452
        %v541 = vunpack.c.l.b16 %v453
        %v542 = vunpack.c.h.b16 %v453
        %v543 = vunpack.c.l.b16 %v454
        %v544 = vunpack.c.h.b16 %v454
        %v545 = vunpack.c.l.b16 %v455
        %v546 = vunpack.c.h.b16 %v455
        %v547 = vunpack.c.l.b16 %v456
        %v548 = vunpack.c.h.b16 %v456
        %v549 = vunpack.c.l.b16 %v457
        %v550 = vunpack.c.h.b16 %v457
        %v551 = vunpack.c.l.b16 %v458
        %v552 = vunpack.c.h.b16 %v458
        %v553 = vunpack.c.l.b16 %v459
        %v554 = vunpack.c.h.b16 %v459
        %v555 = vunpack.c.l.b16 %v460
        %v556 = vunpack.c.h.b16 %v460
        %v557 = vpack.c.b16 %v495, %v493
        %v558 = vpack.c.b16 %v496, %v494
        %v559 = vpack.c.b16 %v499, %v497
        %v560 = vpack.c.b16 %v500, %v498
        %v561 = vpack.c.b16 %v503, %v501
        %v562 = vpack.c.b16 %v504, %v502
        %v563 = vpack.c.b16 %v507, %v505
        %v564 = vpack.c.b16 %v508, %v506
        %v565 = vpack.c.b16 %v511, %v509
        %v566 = vpack.c.b16 %v512, %v510
        %v567 = vpack.c.b16 %v515, %v513
        %v568 = vpack.c.b16 %v516, %v514
        %v569 = vpack.c.b16 %v519, %v517
        %v570 = vpack.c.b16 %v520, %v518
        %v571 = vpack.c.b16 %v523, %v521
        %v572 = vpack.c.b16 %v524, %v522
        %v573 = vpack.c.b16 %v527, %v525
        %v574 = vpack.c.b16 %v528, %v526
        %v575 = vpack.c.b16 %v531, %v529
        %v576 = vpack.c.b16 %v532, %v530
        %v577 = vpack.c.b16 %v535, %v533
        %v578 = vpack.c.b16 %v536, %v534
        %v579 = vpack.c.b16 %v539, %v537
        %v580 = vpack.c.b16 %v540, %v538
        %v581 = vpack.c.b16 %v543, %v541
        %v582 = vpack.c.b16 %v544, %v542
        %v583 = vpack.c.b16 %v547, %v545
        %v584 = vpack.c.b16 %v548, %v546
        %v585 = vpack.c.b16 %v551, %v549
        %v586 = vpack.c.b16 %v552, %v550
        %v587 = vpack.c.b16 %v555, %v553
        %v588 = vpack.c.b16 %v556, %v554
        %621 = vmatprep.subr.bf16.mxu0 %v572
        %622 = vmatpush1.bf16.msra.mxu0 %v571
        %623 = vmatprep.subr.bf16.mxu0 %v570
        %624 = vmatpush1.bf16.msra.mxu0 %v569
        %625 = vmatprep.subr.bf16.mxu0 %v568
        %626 = vmatpush1.bf16.msra.mxu0 %v567
        %627 = vmatprep.subr.bf16.mxu0 %v566
        %628 = vmatpush1.bf16.msra.mxu0 %v565
        %629 = vmatprep.subr.bf16.mxu0 %v564
        %630 = vmatpush1.bf16.msra.mxu0 %v563
        %631 = vmatprep.subr.bf16.mxu0 %v562
        %632 = vmatpush1.bf16.msra.mxu0 %v561
        %633 = vmatprep.subr.bf16.mxu0 %v560
        %634 = vmatpush1.bf16.msra.mxu0 %v559
        %635 = vmatprep.subr.bf16.mxu0 %v558
        %636 = vmatpush1.bf16.msra.mxu0 %v557
        %637 = vmatprep.subr.bf16.mxu0 %v588
        %638 = vmatpush2.bf16.msra.mxu0 %v587
        %639 = vmatprep.subr.bf16.mxu0 %v586
        %640 = vmatpush2.bf16.msra.mxu0 %v585
        %641 = vmatprep.subr.bf16.mxu0 %v584
        %642 = vmatpush2.bf16.msra.mxu0 %v583
        %643 = vmatprep.subr.bf16.mxu0 %v582
        %644 = vmatpush2.bf16.msra.mxu0 %v581
        %645 = vmatprep.subr.bf16.mxu0 %v580
        %646 = vmatpush2.bf16.msra.mxu0 %v579
        %647 = vmatprep.subr.bf16.mxu0 %v578
        %648 = vmatpush2.bf16.msra.mxu0 %v577
        %649 = vmatprep.subr.bf16.mxu0 %v576
        %650 = vmatpush2.bf16.msra.mxu0 %v575
        %651 = vmatprep.subr.bf16.mxu0 %v574
        %652 = vmatpush2.bf16.msra.mxu0 %v573
        %653 = vmatprep.mubr.bf16.mxu0 %v428
        %654 = vmatmul.mubr.bf16.gmra.mxu0 %v427
        %v655 = vpop.f32.mrf.mxu0
        %v656 = vadd.f32 0.0, %v655
        %v657 = vpop.f32.mrf.mxu0
        %v658 = vadd.f32 0.0, %v657
        %v659 = vpop.f32.mrf.mxu0
        %v660 = vpop.f32.mrf.mxu0
        %661 = vdwg.mxu0
        %v662 = vmul.f32 %v656, 0.015625
        %v663 = vmul.f32 %v658, 0.015625
        %v664 = vpack.c.bf16 %v662, %v662
        %v665 = vpack.c.bf16 %v663, %v663
        %v666 = vld [vmem:[#allocation8] sm:$0xff]
        %v667 = vld [vmem:[#allocation8 + $0x8] sm:$0xff]
        %v668 = vld [vmem:[#allocation8 + $0x10] sm:$0xff]
        %v669 = vld [vmem:[#allocation8 + $0x18] sm:$0xff]
        %v670 = vld [vmem:[#allocation8 + $0x20] sm:$0xff]
        %v671 = vld [vmem:[#allocation8 + $0x28] sm:$0xff]
        %v672 = vld [vmem:[#allocation8 + $0x30] sm:$0xff]
        %v673 = vld [vmem:[#allocation8 + $0x38] sm:$0xff]
        %v674 = vld [vmem:[#allocation8 + $0x40] sm:$0xff]
        %v675 = vld [vmem:[#allocation8 + $0x48] sm:$0xff]
        %v676 = vld [vmem:[#allocation8 + $0x50] sm:$0xff]
        %v677 = vld [vmem:[#allocation8 + $0x58] sm:$0xff]
        %v678 = vld [vmem:[#allocation8 + $0x60] sm:$0xff]
        %v679 = vld [vmem:[#allocation8 + $0x68] sm:$0xff]
        %v680 = vld [vmem:[#allocation8 + $0x70] sm:$0xff]
        %v681 = vld [vmem:[#allocation8 + $0x78] sm:$0xff]
        %v682 = vld [vmem:[#allocation8 + $0x80] sm:$0xff]
        %v683 = vld [vmem:[#allocation8 + $0x88] sm:$0xff]
        %v684 = vld [vmem:[#allocation8 + $0x90] sm:$0xff]
        %v685 = vld [vmem:[#allocation8 + $0x98] sm:$0xff]
        %v686 = vld [vmem:[#allocation8 + $0xa0] sm:$0xff]
        %v687 = vld [vmem:[#allocation8 + $0xa8] sm:$0xff]
        %v688 = vld [vmem:[#allocation8 + $0xb0] sm:$0xff]
        %v689 = vld [vmem:[#allocation8 + $0xb8] sm:$0xff]
        %v690 = vld [vmem:[#allocation8 + $0xc0] sm:$0xff]
        %v691 = vld [vmem:[#allocation8 + $0xc8] sm:$0xff]
        %v692 = vld [vmem:[#allocation8 + $0xd0] sm:$0xff]
        %v693 = vld [vmem:[#allocation8 + $0xd8] sm:$0xff]
        %v694 = vld [vmem:[#allocation8 + $0xe0] sm:$0xff]
        %v695 = vld [vmem:[#allocation8 + $0xe8] sm:$0xff]
        %v696 = vld [vmem:[#allocation8 + $0xf0] sm:$0xff]
        %v697 = vld [vmem:[#allocation8 + $0xf8] sm:$0xff]
        %v698 = vld [vmem:[#allocation8 + $0x100] sm:$0xff]
        %v699 = vld [vmem:[#allocation8 + $0x108] sm:$0xff]
        %v700 = vld [vmem:[#allocation8 + $0x110] sm:$0xff]
        %v701 = vld [vmem:[#allocation8 + $0x118] sm:$0xff]
        %v702 = vld [vmem:[#allocation8 + $0x120] sm:$0xff]
        %v703 = vld [vmem:[#allocation8 + $0x128] sm:$0xff]
        %v704 = vld [vmem:[#allocation8 + $0x130] sm:$0xff]
        %v705 = vld [vmem:[#allocation8 + $0x138] sm:$0xff]
        %v706 = vld [vmem:[#allocation8 + $0x140] sm:$0xff]
        %v707 = vld [vmem:[#allocation8 + $0x148] sm:$0xff]
        %v708 = vld [vmem:[#allocation8 + $0x150] sm:$0xff]
        %v709 = vld [vmem:[#allocation8 + $0x158] sm:$0xff]
        %v710 = vld [vmem:[#allocation8 + $0x160] sm:$0xff]
        %v711 = vld [vmem:[#allocation8 + $0x168] sm:$0xff]
        %v712 = vld [vmem:[#allocation8 + $0x170] sm:$0xff]
        %v713 = vld [vmem:[#allocation8 + $0x178] sm:$0xff]
        %v714 = vld [vmem:[#allocation8 + $0x180] sm:$0xff]
        %v715 = vld [vmem:[#allocation8 + $0x188] sm:$0xff]
        %v716 = vld [vmem:[#allocation8 + $0x190] sm:$0xff]
        %v717 = vld [vmem:[#allocation8 + $0x198] sm:$0xff]
        %v718 = vld [vmem:[#allocation8 + $0x1a0] sm:$0xff]
        %v719 = vld [vmem:[#allocation8 + $0x1a8] sm:$0xff]
        %v720 = vld [vmem:[#allocation8 + $0x1b0] sm:$0xff]
        %v721 = vld [vmem:[#allocation8 + $0x1b8] sm:$0xff]
        %v722 = vld [vmem:[#allocation8 + $0x1c0] sm:$0xff]
        %v723 = vld [vmem:[#allocation8 + $0x1c8] sm:$0xff]
        %v724 = vld [vmem:[#allocation8 + $0x1d0] sm:$0xff]
        %v725 = vld [vmem:[#allocation8 + $0x1d8] sm:$0xff]
        %v726 = vld [vmem:[#allocation8 + $0x1e0] sm:$0xff]
        %v727 = vld [vmem:[#allocation8 + $0x1e8] sm:$0xff]
        %v728 = vld [vmem:[#allocation8 + $0x1f0] sm:$0xff]
        %v729 = vld [vmem:[#allocation8 + $0x1f8] sm:$0xff]
        %v730 = vld [vmem:[#allocation8 + $0x200] sm:$0xff]
        %v731 = vld [vmem:[#allocation8 + $0x208] sm:$0xff]
        %v732 = vld [vmem:[#allocation8 + $0x210] sm:$0xff]
        %v733 = vld [vmem:[#allocation8 + $0x218] sm:$0xff]
        %v734 = vld [vmem:[#allocation8 + $0x220] sm:$0xff]
        %v735 = vld [vmem:[#allocation8 + $0x228] sm:$0xff]
        %v736 = vld [vmem:[#allocation8 + $0x230] sm:$0xff]
        %v737 = vld [vmem:[#allocation8 + $0x238] sm:$0xff]
        %v738 = vld [vmem:[#allocation8 + $0x240] sm:$0xff]
        %v739 = vld [vmem:[#allocation8 + $0x248] sm:$0xff]
        %v740 = vld [vmem:[#allocation8 + $0x250] sm:$0xff]
        %v741 = vld [vmem:[#allocation8 + $0x258] sm:$0xff]
        %v742 = vld [vmem:[#allocation8 + $0x260] sm:$0xff]
        %v743 = vld [vmem:[#allocation8 + $0x268] sm:$0xff]
        %v744 = vld [vmem:[#allocation8 + $0x270] sm:$0xff]
        %v745 = vld [vmem:[#allocation8 + $0x278] sm:$0xff]
        %v746 = vld [vmem:[#allocation8 + $0x280] sm:$0xff]
        %v747 = vld [vmem:[#allocation8 + $0x288] sm:$0xff]
        %v748 = vld [vmem:[#allocation8 + $0x290] sm:$0xff]
        %v749 = vld [vmem:[#allocation8 + $0x298] sm:$0xff]
        %v750 = vld [vmem:[#allocation8 + $0x2a0] sm:$0xff]
        %v751 = vld [vmem:[#allocation8 + $0x2a8] sm:$0xff]
        %v752 = vld [vmem:[#allocation8 + $0x2b0] sm:$0xff]
        %v753 = vld [vmem:[#allocation8 + $0x2b8] sm:$0xff]
        %v754 = vld [vmem:[#allocation8 + $0x2c0] sm:$0xff]
        %v755 = vld [vmem:[#allocation8 + $0x2c8] sm:$0xff]
        %v756 = vld [vmem:[#allocation8 + $0x2d0] sm:$0xff]
        %v757 = vld [vmem:[#allocation8 + $0x2d8] sm:$0xff]
        %v758 = vld [vmem:[#allocation8 + $0x2e0] sm:$0xff]
        %v759 = vld [vmem:[#allocation8 + $0x2e8] sm:$0xff]
        %v760 = vld [vmem:[#allocation8 + $0x2f0] sm:$0xff]
        %v761 = vld [vmem:[#allocation8 + $0x2f8] sm:$0xff]
        %v858 = vunpack.c.l.b16 %v666
        %v859 = vunpack.c.h.b16 %v666
        %v860 = vunpack.c.l.b16 %v667
        %v861 = vunpack.c.h.b16 %v667
        %v862 = vunpack.c.l.b16 %v668
        %v863 = vunpack.c.h.b16 %v668
        %v864 = vunpack.c.l.b16 %v669
        %v865 = vunpack.c.h.b16 %v669
        %v866 = vunpack.c.l.b16 %v670
        %v867 = vunpack.c.h.b16 %v670
        %v868 = vunpack.c.l.b16 %v671
        %v869 = vunpack.c.h.b16 %v671
        %v870 = vunpack.c.l.b16 %v672
        %v871 = vunpack.c.h.b16 %v672
        %v872 = vunpack.c.l.b16 %v673
        %v873 = vunpack.c.h.b16 %v673
        %v874 = vunpack.c.l.b16 %v674
        %v875 = vunpack.c.h.b16 %v674
        %v876 = vunpack.c.l.b16 %v675
        %v877 = vunpack.c.h.b16 %v675
        %v878 = vunpack.c.l.b16 %v676
        %v879 = vunpack.c.h.b16 %v676
        %v880 = vunpack.c.l.b16 %v677
        %v881 = vunpack.c.h.b16 %v677
        %v882 = vunpack.c.l.b16 %v678
        %v883 = vunpack.c.h.b16 %v678
        %v884 = vunpack.c.l.b16 %v679
        %v885 = vunpack.c.h.b16 %v679
        %v886 = vunpack.c.l.b16 %v680
        %v887 = vunpack.c.h.b16 %v680
        %v888 = vunpack.c.l.b16 %v681
        %v889 = vunpack.c.h.b16 %v681
        %v890 = vunpack.c.l.b16 %v682
        %v891 = vunpack.c.h.b16 %v682
        %v892 = vunpack.c.l.b16 %v683
        %v893 = vunpack.c.h.b16 %v683
        %v894 = vunpack.c.l.b16 %v684
        %v895 = vunpack.c.h.b16 %v684
        %v896 = vunpack.c.l.b16 %v685
        %v897 = vunpack.c.h.b16 %v685
        %v898 = vunpack.c.l.b16 %v686
        %v899 = vunpack.c.h.b16 %v686
        %v900 = vunpack.c.l.b16 %v687
        %v901 = vunpack.c.h.b16 %v687
        %v902 = vunpack.c.l.b16 %v688
        %v903 = vunpack.c.h.b16 %v688
        %v904 = vunpack.c.l.b16 %v689
        %v905 = vunpack.c.h.b16 %v689
        %v906 = vunpack.c.l.b16 %v690
        %v907 = vunpack.c.h.b16 %v690
        %v908 = vunpack.c.l.b16 %v691
        %v909 = vunpack.c.h.b16 %v691
        %v910 = vunpack.c.l.b16 %v692
        %v911 = vunpack.c.h.b16 %v692
        %v912 = vunpack.c.l.b16 %v693
        %v913 = vunpack.c.h.b16 %v693
        %v914 = vunpack.c.l.b16 %v694
        %v915 = vunpack.c.h.b16 %v694
        %v916 = vunpack.c.l.b16 %v695
        %v917 = vunpack.c.h.b16 %v695
        %v918 = vunpack.c.l.b16 %v696
        %v919 = vunpack.c.h.b16 %v696
        %v920 = vunpack.c.l.b16 %v697
        %v921 = vunpack.c.h.b16 %v697
        %v922 = vunpack.c.l.b16 %v698
        %v923 = vunpack.c.h.b16 %v698
        %v924 = vunpack.c.l.b16 %v699
        %v925 = vunpack.c.h.b16 %v699
        %v926 = vunpack.c.l.b16 %v700
        %v927 = vunpack.c.h.b16 %v700
        %v928 = vunpack.c.l.b16 %v701
        %v929 = vunpack.c.h.b16 %v701
        %v930 = vunpack.c.l.b16 %v702
        %v931 = vunpack.c.h.b16 %v702
        %v932 = vunpack.c.l.b16 %v703
        %v933 = vunpack.c.h.b16 %v703
        %v934 = vunpack.c.l.b16 %v704
        %v935 = vunpack.c.h.b16 %v704
        %v936 = vunpack.c.l.b16 %v705
        %v937 = vunpack.c.h.b16 %v705
        %v938 = vunpack.c.l.b16 %v706
        %v939 = vunpack.c.h.b16 %v706
        %v940 = vunpack.c.l.b16 %v707
        %v941 = vunpack.c.h.b16 %v707
        %v942 = vunpack.c.l.b16 %v708
        %v943 = vunpack.c.h.b16 %v708
        %v944 = vunpack.c.l.b16 %v709
        %v945 = vunpack.c.h.b16 %v709
        %v946 = vunpack.c.l.b16 %v710
        %v947 = vunpack.c.h.b16 %v710
        %v948 = vunpack.c.l.b16 %v711
        %v949 = vunpack.c.h.b16 %v711
        %v950 = vunpack.c.l.b16 %v712
        %v951 = vunpack.c.h.b16 %v712
        %v952 = vunpack.c.l.b16 %v713
        %v953 = vunpack.c.h.b16 %v713
        %v954 = vunpack.c.l.b16 %v714
        %v955 = vunpack.c.h.b16 %v714
        %v956 = vunpack.c.l.b16 %v715
        %v957 = vunpack.c.h.b16 %v715
        %v958 = vunpack.c.l.b16 %v716
        %v959 = vunpack.c.h.b16 %v716
        %v960 = vunpack.c.l.b16 %v717
        %v961 = vunpack.c.h.b16 %v717
        %v962 = vunpack.c.l.b16 %v718
        %v963 = vunpack.c.h.b16 %v718
        %v964 = vunpack.c.l.b16 %v719
        %v965 = vunpack.c.h.b16 %v719
        %v966 = vunpack.c.l.b16 %v720
        %v967 = vunpack.c.h.b16 %v720
        %v968 = vunpack.c.l.b16 %v721
        %v969 = vunpack.c.h.b16 %v721
        %v970 = vunpack.c.l.b16 %v722
        %v971 = vunpack.c.h.b16 %v722
        %v972 = vunpack.c.l.b16 %v723
        %v973 = vunpack.c.h.b16 %v723
        %v974 = vunpack.c.l.b16 %v724
        %v975 = vunpack.c.h.b16 %v724
        %v976 = vunpack.c.l.b16 %v725
        %v977 = vunpack.c.h.b16 %v725
        %v978 = vunpack.c.l.b16 %v726
        %v979 = vunpack.c.h.b16 %v726
        %v980 = vunpack.c.l.b16 %v727
        %v981 = vunpack.c.h.b16 %v727
        %v982 = vunpack.c.l.b16 %v728
        %v983 = vunpack.c.h.b16 %v728
        %v984 = vunpack.c.l.b16 %v729
        %v985 = vunpack.c.h.b16 %v729
        %v986 = vunpack.c.l.b16 %v730
        %v987 = vunpack.c.h.b16 %v730
        %v988 = vunpack.c.l.b16 %v731
        %v989 = vunpack.c.h.b16 %v731
        %v990 = vunpack.c.l.b16 %v732
        %v991 = vunpack.c.h.b16 %v732
        %v992 = vunpack.c.l.b16 %v733
        %v993 = vunpack.c.h.b16 %v733
        %v994 = vunpack.c.l.b16 %v734
        %v995 = vunpack.c.h.b16 %v734
        %v996 = vunpack.c.l.b16 %v735
        %v997 = vunpack.c.h.b16 %v735
        %v998 = vunpack.c.l.b16 %v736
        %v999 = vunpack.c.h.b16 %v736
        %v1000 = vunpack.c.l.b16 %v737
        %v1001 = vunpack.c.h.b16 %v737
        %v1002 = vunpack.c.l.b16 %v738
        %v1003 = vunpack.c.h.b16 %v738
        %v1004 = vunpack.c.l.b16 %v739
        %v1005 = vunpack.c.h.b16 %v739
        %v1006 = vunpack.c.l.b16 %v740
        %v1007 = vunpack.c.h.b16 %v740
        %v1008 = vunpack.c.l.b16 %v741
        %v1009 = vunpack.c.h.b16 %v741
        %v1010 = vunpack.c.l.b16 %v742
        %v1011 = vunpack.c.h.b16 %v742
        %v1012 = vunpack.c.l.b16 %v743
        %v1013 = vunpack.c.h.b16 %v743
        %v1014 = vunpack.c.l.b16 %v744
        %v1015 = vunpack.c.h.b16 %v744
        %v1016 = vunpack.c.l.b16 %v745
        %v1017 = vunpack.c.h.b16 %v745
        %v1018 = vunpack.c.l.b16 %v746
        %v1019 = vunpack.c.h.b16 %v746
        %v1020 = vunpack.c.l.b16 %v747
        %v1021 = vunpack.c.h.b16 %v747
        %v1022 = vunpack.c.l.b16 %v748
        %v1023 = vunpack.c.h.b16 %v748
        %v1024 = vunpack.c.l.b16 %v749
        %v1025 = vunpack.c.h.b16 %v749
        %v1026 = vunpack.c.l.b16 %v750
        %v1027 = vunpack.c.h.b16 %v750
        %v1028 = vunpack.c.l.b16 %v751
        %v1029 = vunpack.c.h.b16 %v751
        %v1030 = vunpack.c.l.b16 %v752
        %v1031 = vunpack.c.h.b16 %v752
        %v1032 = vunpack.c.l.b16 %v753
        %v1033 = vunpack.c.h.b16 %v753
        %v1034 = vunpack.c.l.b16 %v754
        %v1035 = vunpack.c.h.b16 %v754
        %v1036 = vunpack.c.l.b16 %v755
        %v1037 = vunpack.c.h.b16 %v755
        %v1038 = vunpack.c.l.b16 %v756
        %v1039 = vunpack.c.h.b16 %v756
        %v1040 = vunpack.c.l.b16 %v757
        %v1041 = vunpack.c.h.b16 %v757
        %v1042 = vunpack.c.l.b16 %v758
        %v1043 = vunpack.c.h.b16 %v758
        %v1044 = vunpack.c.l.b16 %v759
        %v1045 = vunpack.c.h.b16 %v759
        %v1046 = vunpack.c.l.b16 %v760
        %v1047 = vunpack.c.h.b16 %v760
        %v1048 = vunpack.c.l.b16 %v761
        %v1049 = vunpack.c.h.b16 %v761
        %v1050 = vpack.c.b16 %v864, %v858
        %v1051 = vpack.c.b16 %v865, %v859
        %v1052 = vpack.c.b16 %v866, %v860
        %v1053 = vpack.c.b16 %v867, %v861
        %v1054 = vpack.c.b16 %v868, %v862
        %v1055 = vpack.c.b16 %v869, %v863
        %v1056 = vpack.c.b16 %v876, %v870
        %v1057 = vpack.c.b16 %v877, %v871
        %v1058 = vpack.c.b16 %v878, %v872
        %v1059 = vpack.c.b16 %v879, %v873
        %v1060 = vpack.c.b16 %v880, %v874
        %v1061 = vpack.c.b16 %v881, %v875
        %v1062 = vpack.c.b16 %v888, %v882
        %v1063 = vpack.c.b16 %v889, %v883
        %v1064 = vpack.c.b16 %v890, %v884
        %v1065 = vpack.c.b16 %v891, %v885
        %v1066 = vpack.c.b16 %v892, %v886
        %v1067 = vpack.c.b16 %v893, %v887
        %v1068 = vpack.c.b16 %v900, %v894
        %v1069 = vpack.c.b16 %v901, %v895
        %v1070 = vpack.c.b16 %v902, %v896
        %v1071 = vpack.c.b16 %v903, %v897
        %v1072 = vpack.c.b16 %v904, %v898
        %v1073 = vpack.c.b16 %v905, %v899
        %v1074 = vpack.c.b16 %v912, %v906
        %v1075 = vpack.c.b16 %v913, %v907
        %v1076 = vpack.c.b16 %v914, %v908
        %v1077 = vpack.c.b16 %v915, %v909
        %v1078 = vpack.c.b16 %v916, %v910
        %v1079 = vpack.c.b16 %v917, %v911
        %v1080 = vpack.c.b16 %v924, %v918
        %v1081 = vpack.c.b16 %v925, %v919
        %v1082 = vpack.c.b16 %v926, %v920
        %v1083 = vpack.c.b16 %v927, %v921
        %v1084 = vpack.c.b16 %v928, %v922
        %v1085 = vpack.c.b16 %v929, %v923
        %v1086 = vpack.c.b16 %v936, %v930
        %v1087 = vpack.c.b16 %v937, %v931
        %v1088 = vpack.c.b16 %v938, %v932
        %v1089 = vpack.c.b16 %v939, %v933
        %v1090 = vpack.c.b16 %v940, %v934
        %v1091 = vpack.c.b16 %v941, %v935
        %v1092 = vpack.c.b16 %v948, %v942
        %v1093 = vpack.c.b16 %v949, %v943
        %v1094 = vpack.c.b16 %v950, %v944
        %v1095 = vpack.c.b16 %v951, %v945
        %v1096 = vpack.c.b16 %v952, %v946
        %v1097 = vpack.c.b16 %v953, %v947
        %v1098 = vpack.c.b16 %v960, %v954
        %v1099 = vpack.c.b16 %v961, %v955
        %v1100 = vpack.c.b16 %v962, %v956
        %v1101 = vpack.c.b16 %v963, %v957
        %v1102 = vpack.c.b16 %v964, %v958
        %v1103 = vpack.c.b16 %v965, %v959
        %v1104 = vpack.c.b16 %v972, %v966
        %v1105 = vpack.c.b16 %v973, %v967
        %v1106 = vpack.c.b16 %v974, %v968
        %v1107 = vpack.c.b16 %v975, %v969
        %v1108 = vpack.c.b16 %v976, %v970
        %v1109 = vpack.c.b16 %v977, %v971
        %v1110 = vpack.c.b16 %v984, %v978
        %v1111 = vpack.c.b16 %v985, %v979
        %v1112 = vpack.c.b16 %v986, %v980
        %v1113 = vpack.c.b16 %v987, %v981
        %v1114 = vpack.c.b16 %v988, %v982
        %v1115 = vpack.c.b16 %v989, %v983
        %v1116 = vpack.c.b16 %v996, %v990
        %v1117 = vpack.c.b16 %v997, %v991
        %v1118 = vpack.c.b16 %v998, %v992
        %v1119 = vpack.c.b16 %v999, %v993
        %v1120 = vpack.c.b16 %v1000, %v994
        %v1121 = vpack.c.b16 %v1001, %v995
        %v1122 = vpack.c.b16 %v1008, %v1002
        %v1123 = vpack.c.b16 %v1009, %v1003
        %v1124 = vpack.c.b16 %v1010, %v1004
        %v1125 = vpack.c.b16 %v1011, %v1005
        %v1126 = vpack.c.b16 %v1012, %v1006
        %v1127 = vpack.c.b16 %v1013, %v1007
        %v1128 = vpack.c.b16 %v1020, %v1014
        %v1129 = vpack.c.b16 %v1021, %v1015
        %v1130 = vpack.c.b16 %v1022, %v1016
        %v1131 = vpack.c.b16 %v1023, %v1017
        %v1132 = vpack.c.b16 %v1024, %v1018
        %v1133 = vpack.c.b16 %v1025, %v1019
        %v1134 = vpack.c.b16 %v1032, %v1026
        %v1135 = vpack.c.b16 %v1033, %v1027
        %v1136 = vpack.c.b16 %v1034, %v1028
        %v1137 = vpack.c.b16 %v1035, %v1029
        %v1138 = vpack.c.b16 %v1036, %v1030
        %v1139 = vpack.c.b16 %v1037, %v1031
        %v1140 = vpack.c.b16 %v1044, %v1038
        %v1141 = vpack.c.b16 %v1045, %v1039
        %v1142 = vpack.c.b16 %v1046, %v1040
        %v1143 = vpack.c.b16 %v1047, %v1041
        %v1144 = vpack.c.b16 %v1048, %v1042
        %v1145 = vpack.c.b16 %v1049, %v1043
        %v1243 = vlaneseq
        %v1244 = vshrl.u32 %v1243, 7
        %v1245 = vsub.s32 0, %v1244
        %v1246 = vrot.slane %v414, %v1245
        %v1247 = vlaneseq
        %v1248 = vshrl.u32 %v1247, 7
        %v1249 = vsub.s32 1, %v1248
        %v1250 = vrot.slane %v414, %v1249
        %v1251 = vlaneseq
        %v1252 = vshrl.u32 %v1251, 7
        %v1253 = vsub.s32 2, %v1252
        %v1254 = vrot.slane %v414, %v1253
        %v1255 = vlaneseq
        %v1256 = vshrl.u32 %v1255, 7
        %v1257 = vsub.s32 3, %v1256
        %v1258 = vrot.slane %v414, %v1257
        %v1259 = vlaneseq
        %v1260 = vshrl.u32 %v1259, 7
        %v1261 = vsub.s32 4, %v1260
        %v1262 = vrot.slane %v414, %v1261
        %v1263 = vlaneseq
        %v1264 = vshrl.u32 %v1263, 7
        %v1265 = vsub.s32 5, %v1264
        %v1266 = vrot.slane %v414, %v1265
        %1273 = vmatprep.subr.bf16.mxu0 %v1093
        %1274 = vmatpush1.bf16.msra.mxu0 %v1092
        %1275 = vmatprep.subr.bf16.mxu0 %v1087
        %1276 = vmatpush1.bf16.msra.mxu0 %v1086
        %1277 = vmatprep.subr.bf16.mxu0 %v1081
        %1278 = vmatpush1.bf16.msra.mxu0 %v1080
        %1279 = vmatprep.subr.bf16.mxu0 %v1075
        %1280 = vmatpush1.bf16.msra.mxu0 %v1074
        %1281 = vmatprep.subr.bf16.mxu0 %v1069
        %1282 = vmatpush1.bf16.msra.mxu0 %v1068
        %1283 = vmatprep.subr.bf16.mxu0 %v1063
        %1284 = vmatpush1.bf16.msra.mxu0 %v1062
        %1285 = vmatprep.subr.bf16.mxu0 %v1057
        %1286 = vmatpush1.bf16.msra.mxu0 %v1056
        %1287 = vmatprep.subr.bf16.mxu0 %v1051
        %1288 = vmatpush1.bf16.msra.mxu0 %v1050
        %1289 = vmatprep.subr.bf16.mxu0 %v1141
        %1290 = vmatpush2.bf16.msra.mxu0 %v1140
        %1291 = vmatprep.subr.bf16.mxu0 %v1135
        %1292 = vmatpush2.bf16.msra.mxu0 %v1134
        %1293 = vmatprep.subr.bf16.mxu0 %v1129
        %1294 = vmatpush2.bf16.msra.mxu0 %v1128
        %1295 = vmatprep.subr.bf16.mxu0 %v1123
        %1296 = vmatpush2.bf16.msra.mxu0 %v1122
        %1297 = vmatprep.subr.bf16.mxu0 %v1117
        %1298 = vmatpush2.bf16.msra.mxu0 %v1116
        %1299 = vmatprep.subr.bf16.mxu0 %v1111
        %1300 = vmatpush2.bf16.msra.mxu0 %v1110
        %1301 = vmatprep.subr.bf16.mxu0 %v1105
        %1302 = vmatpush2.bf16.msra.mxu0 %v1104
        %1303 = vmatprep.subr.bf16.mxu0 %v1099
        %1304 = vmatpush2.bf16.msra.mxu0 %v1098
        %1305 = vmatprep.mubr.bf16.mxu0 %v665
        %1306 = vmatmul.mubr.bf16.gmra.mxu0 %v664
        %v1307 = vpop.f32.mrf.mxu0
        %v1308 = vadd.f32 %v1246, %v1307
        %v1309 = vpop.f32.mrf.mxu0
        %v1310 = vadd.f32 %v1250, %v1309
        %v1311 = vpop.f32.mrf.mxu0
        %v1312 = vpop.f32.mrf.mxu0
        %1313 = vdwg.mxu0
        %1314 = vmatprep.subr.bf16.mxu0 %v1095
        %1315 = vmatpush1.bf16.msra.mxu0 %v1094
        %1316 = vmatprep.subr.bf16.mxu0 %v1089
        %1317 = vmatpush1.bf16.msra.mxu0 %v1088
        %1318 = vmatprep.subr.bf16.mxu0 %v1083
        %1319 = vmatpush1.bf16.msra.mxu0 %v1082
        %1320 = vmatprep.subr.bf16.mxu0 %v1077
        %1321 = vmatpush1.bf16.msra.mxu0 %v1076
        %1322 = vmatprep.subr.bf16.mxu0 %v1071
        %1323 = vmatpush1.bf16.msra.mxu0 %v1070
        %1324 = vmatprep.subr.bf16.mxu0 %v1065
        %1325 = vmatpush1.bf16.msra.mxu0 %v1064
        %1326 = vmatprep.subr.bf16.mxu0 %v1059
        %1327 = vmatpush1.bf16.msra.mxu0 %v1058
        %1328 = vmatprep.subr.bf16.mxu0 %v1053
        %1329 = vmatpush1.bf16.msra.mxu0 %v1052
        %1330 = vmatprep.subr.bf16.mxu0 %v1143
        %1331 = vmatpush2.bf16.msra.mxu0 %v1142
        %1332 = vmatprep.subr.bf16.mxu0 %v1137
        %1333 = vmatpush2.bf16.msra.mxu0 %v1136
        %1334 = vmatprep.subr.bf16.mxu0 %v1131
        %1335 = vmatpush2.bf16.msra.mxu0 %v1130
        %1336 = vmatprep.subr.bf16.mxu0 %v1125
        %1337 = vmatpush2.bf16.msra.mxu0 %v1124
        %1338 = vmatprep.subr.bf16.mxu0 %v1119
        %1339 = vmatpush2.bf16.msra.mxu0 %v1118
        %1340 = vmatprep.subr.bf16.mxu0 %v1113
        %1341 = vmatpush2.bf16.msra.mxu0 %v1112
        %1342 = vmatprep.subr.bf16.mxu0 %v1107
        %1343 = vmatpush2.bf16.msra.mxu0 %v1106
        %1344 = vmatprep.subr.bf16.mxu0 %v1101
        %1345 = vmatpush2.bf16.msra.mxu0 %v1100
        %1346 = vmatprep.mubr.bf16.mxu0 %v665
        %1347 = vmatmul.mubr.bf16.gmra.mxu0 %v664
        %v1348 = vpop.f32.mrf.mxu0
        %v1349 = vadd.f32 %v1254, %v1348
        %v1350 = vpop.f32.mrf.mxu0
        %v1351 = vadd.f32 %v1258, %v1350
        %v1352 = vpop.f32.mrf.mxu0
        %v1353 = vpop.f32.mrf.mxu0
        %1354 = vdwg.mxu0
        %1355 = vmatprep.subr.bf16.mxu0 %v1097
        %1356 = vmatpush1.bf16.msra.mxu0 %v1096
        %1357 = vmatprep.subr.bf16.mxu0 %v1091
        %1358 = vmatpush1.bf16.msra.mxu0 %v1090
        %1359 = vmatprep.subr.bf16.mxu0 %v1085
        %1360 = vmatpush1.bf16.msra.mxu0 %v1084
        %1361 = vmatprep.subr.bf16.mxu0 %v1079
        %1362 = vmatpush1.bf16.msra.mxu0 %v1078
        %1363 = vmatprep.subr.bf16.mxu0 %v1073
        %1364 = vmatpush1.bf16.msra.mxu0 %v1072
        %1365 = vmatprep.subr.bf16.mxu0 %v1067
        %1366 = vmatpush1.bf16.msra.mxu0 %v1066
        %1367 = vmatprep.subr.bf16.mxu0 %v1061
        %1368 = vmatpush1.bf16.msra.mxu0 %v1060
        %1369 = vmatprep.subr.bf16.mxu0 %v1055
        %1370 = vmatpush1.bf16.msra.mxu0 %v1054
        %1371 = vmatprep.subr.bf16.mxu0 %v1145
        %1372 = vmatpush2.bf16.msra.mxu0 %v1144
        %1373 = vmatprep.subr.bf16.mxu0 %v1139
        %1374 = vmatpush2.bf16.msra.mxu0 %v1138
        %1375 = vmatprep.subr.bf16.mxu0 %v1133
        %1376 = vmatpush2.bf16.msra.mxu0 %v1132
        %1377 = vmatprep.subr.bf16.mxu0 %v1127
        %1378 = vmatpush2.bf16.msra.mxu0 %v1126
        %1379 = vmatprep.subr.bf16.mxu0 %v1121
        %1380 = vmatpush2.bf16.msra.mxu0 %v1120
        %1381 = vmatprep.subr.bf16.mxu0 %v1115
        %1382 = vmatpush2.bf16.msra.mxu0 %v1114
        %1383 = vmatprep.subr.bf16.mxu0 %v1109
        %1384 = vmatpush2.bf16.msra.mxu0 %v1108
        %1385 = vmatprep.subr.bf16.mxu0 %v1103
        %1386 = vmatpush2.bf16.msra.mxu0 %v1102
        %1387 = vmatprep.mubr.bf16.mxu0 %v665
        %1388 = vmatmul.mubr.bf16.gmra.mxu0 %v664
        %v1389 = vpop.f32.mrf.mxu0
        %v1390 = vadd.f32 %v1262, %v1389
        %v1391 = vpop.f32.mrf.mxu0
        %v1392 = vadd.f32 %v1266, %v1391
        %v1393 = vpop.f32.mrf.mxu0
        %v1394 = vpop.f32.mrf.mxu0
        %1395 = vdwg.mxu0
        %v1396 = vld [vmem:[#allocation10] sm:$0xff]
        %v1397 = vld [vmem:[#allocation10 + $0x8] sm:$0xff]
        %v1398 = vld [vmem:[#allocation10 + $0x10] sm:$0xff]
        %v1399 = vld [vmem:[#allocation10 + $0x18] sm:$0xff]
        %v1400 = vld [vmem:[#allocation10 + $0x20] sm:$0xff]
        %v1401 = vld [vmem:[#allocation10 + $0x28] sm:$0xff]
        %v1402 = vld [vmem:[#allocation10 + $0x30] sm:$0xff]
        %v1403 = vld [vmem:[#allocation10 + $0x38] sm:$0xff]
        %v1404 = vld [vmem:[#allocation10 + $0x40] sm:$0xff]
        %v1405 = vld [vmem:[#allocation10 + $0x48] sm:$0xff]
        %v1406 = vld [vmem:[#allocation10 + $0x50] sm:$0xff]
        %v1407 = vld [vmem:[#allocation10 + $0x58] sm:$0xff]
        %v1408 = vld [vmem:[#allocation10 + $0x60] sm:$0xff]
        %v1409 = vld [vmem:[#allocation10 + $0x68] sm:$0xff]
        %v1410 = vld [vmem:[#allocation10 + $0x70] sm:$0xff]
        %v1411 = vld [vmem:[#allocation10 + $0x78] sm:$0xff]
        %v1412 = vld [vmem:[#allocation10 + $0x80] sm:$0xff]
        %v1413 = vld [vmem:[#allocation10 + $0x88] sm:$0xff]
        %v1414 = vld [vmem:[#allocation10 + $0x90] sm:$0xff]
        %v1415 = vld [vmem:[#allocation10 + $0x98] sm:$0xff]
        %v1416 = vld [vmem:[#allocation10 + $0xa0] sm:$0xff]
        %v1417 = vld [vmem:[#allocation10 + $0xa8] sm:$0xff]
        %v1418 = vld [vmem:[#allocation10 + $0xb0] sm:$0xff]
        %v1419 = vld [vmem:[#allocation10 + $0xb8] sm:$0xff]
        %v1420 = vld [vmem:[#allocation10 + $0xc0] sm:$0xff]
        %v1421 = vld [vmem:[#allocation10 + $0xc8] sm:$0xff]
        %v1422 = vld [vmem:[#allocation10 + $0xd0] sm:$0xff]
        %v1423 = vld [vmem:[#allocation10 + $0xd8] sm:$0xff]
        %v1424 = vld [vmem:[#allocation10 + $0xe0] sm:$0xff]
        %v1425 = vld [vmem:[#allocation10 + $0xe8] sm:$0xff]
        %v1426 = vld [vmem:[#allocation10 + $0xf0] sm:$0xff]
        %v1427 = vld [vmem:[#allocation10 + $0xf8] sm:$0xff]
        %v1428 = vld [vmem:[#allocation10 + $0x100] sm:$0xff]
        %v1429 = vld [vmem:[#allocation10 + $0x108] sm:$0xff]
        %v1430 = vld [vmem:[#allocation10 + $0x110] sm:$0xff]
        %v1431 = vld [vmem:[#allocation10 + $0x118] sm:$0xff]
        %v1432 = vld [vmem:[#allocation10 + $0x120] sm:$0xff]
        %v1433 = vld [vmem:[#allocation10 + $0x128] sm:$0xff]
        %v1434 = vld [vmem:[#allocation10 + $0x130] sm:$0xff]
        %v1435 = vld [vmem:[#allocation10 + $0x138] sm:$0xff]
        %v1436 = vld [vmem:[#allocation10 + $0x140] sm:$0xff]
        %v1437 = vld [vmem:[#allocation10 + $0x148] sm:$0xff]
        %v1438 = vld [vmem:[#allocation10 + $0x150] sm:$0xff]
        %v1439 = vld [vmem:[#allocation10 + $0x158] sm:$0xff]
        %v1440 = vld [vmem:[#allocation10 + $0x160] sm:$0xff]
        %v1441 = vld [vmem:[#allocation10 + $0x168] sm:$0xff]
        %v1442 = vld [vmem:[#allocation10 + $0x170] sm:$0xff]
        %v1443 = vld [vmem:[#allocation10 + $0x178] sm:$0xff]
        %v1444 = vld [vmem:[#allocation10 + $0x180] sm:$0xff]
        %v1445 = vld [vmem:[#allocation10 + $0x188] sm:$0xff]
        %v1446 = vld [vmem:[#allocation10 + $0x190] sm:$0xff]
        %v1447 = vld [vmem:[#allocation10 + $0x198] sm:$0xff]
        %v1448 = vld [vmem:[#allocation10 + $0x1a0] sm:$0xff]
        %v1449 = vld [vmem:[#allocation10 + $0x1a8] sm:$0xff]
        %v1450 = vld [vmem:[#allocation10 + $0x1b0] sm:$0xff]
        %v1451 = vld [vmem:[#allocation10 + $0x1b8] sm:$0xff]
        %v1452 = vld [vmem:[#allocation10 + $0x1c0] sm:$0xff]
        %v1453 = vld [vmem:[#allocation10 + $0x1c8] sm:$0xff]
        %v1454 = vld [vmem:[#allocation10 + $0x1d0] sm:$0xff]
        %v1455 = vld [vmem:[#allocation10 + $0x1d8] sm:$0xff]
        %v1456 = vld [vmem:[#allocation10 + $0x1e0] sm:$0xff]
        %v1457 = vld [vmem:[#allocation10 + $0x1e8] sm:$0xff]
        %v1458 = vld [vmem:[#allocation10 + $0x1f0] sm:$0xff]
        %v1459 = vld [vmem:[#allocation10 + $0x1f8] sm:$0xff]
        %v1460 = vld [vmem:[#allocation10 + $0x200] sm:$0xff]
        %v1461 = vld [vmem:[#allocation10 + $0x208] sm:$0xff]
        %v1462 = vld [vmem:[#allocation10 + $0x210] sm:$0xff]
        %v1463 = vld [vmem:[#allocation10 + $0x218] sm:$0xff]
        %v1464 = vld [vmem:[#allocation10 + $0x220] sm:$0xff]
        %v1465 = vld [vmem:[#allocation10 + $0x228] sm:$0xff]
        %v1466 = vld [vmem:[#allocation10 + $0x230] sm:$0xff]
        %v1467 = vld [vmem:[#allocation10 + $0x238] sm:$0xff]
        %v1468 = vld [vmem:[#allocation10 + $0x240] sm:$0xff]
        %v1469 = vld [vmem:[#allocation10 + $0x248] sm:$0xff]
        %v1470 = vld [vmem:[#allocation10 + $0x250] sm:$0xff]
        %v1471 = vld [vmem:[#allocation10 + $0x258] sm:$0xff]
        %v1472 = vld [vmem:[#allocation10 + $0x260] sm:$0xff]
        %v1473 = vld [vmem:[#allocation10 + $0x268] sm:$0xff]
        %v1474 = vld [vmem:[#allocation10 + $0x270] sm:$0xff]
        %v1475 = vld [vmem:[#allocation10 + $0x278] sm:$0xff]
        %v1476 = vld [vmem:[#allocation10 + $0x280] sm:$0xff]
        %v1477 = vld [vmem:[#allocation10 + $0x288] sm:$0xff]
        %v1478 = vld [vmem:[#allocation10 + $0x290] sm:$0xff]
        %v1479 = vld [vmem:[#allocation10 + $0x298] sm:$0xff]
        %v1480 = vld [vmem:[#allocation10 + $0x2a0] sm:$0xff]
        %v1481 = vld [vmem:[#allocation10 + $0x2a8] sm:$0xff]
        %v1482 = vld [vmem:[#allocation10 + $0x2b0] sm:$0xff]
        %v1483 = vld [vmem:[#allocation10 + $0x2b8] sm:$0xff]
        %v1484 = vld [vmem:[#allocation10 + $0x2c0] sm:$0xff]
        %v1485 = vld [vmem:[#allocation10 + $0x2c8] sm:$0xff]
        %v1486 = vld [vmem:[#allocation10 + $0x2d0] sm:$0xff]
        %v1487 = vld [vmem:[#allocation10 + $0x2d8] sm:$0xff]
        %v1488 = vld [vmem:[#allocation10 + $0x2e0] sm:$0xff]
        %v1489 = vld [vmem:[#allocation10 + $0x2e8] sm:$0xff]
        %v1490 = vld [vmem:[#allocation10 + $0x2f0] sm:$0xff]
        %v1491 = vld [vmem:[#allocation10 + $0x2f8] sm:$0xff]
        %v1588 = vunpack.c.l.b16 %v1396
        %v1589 = vunpack.c.h.b16 %v1396
        %v1590 = vunpack.c.l.b16 %v1397
        %v1591 = vunpack.c.h.b16 %v1397
        %v1592 = vunpack.c.l.b16 %v1398
        %v1593 = vunpack.c.h.b16 %v1398
        %v1594 = vunpack.c.l.b16 %v1399
        %v1595 = vunpack.c.h.b16 %v1399
        %v1596 = vunpack.c.l.b16 %v1400
        %v1597 = vunpack.c.h.b16 %v1400
        %v1598 = vunpack.c.l.b16 %v1401
        %v1599 = vunpack.c.h.b16 %v1401
        %v1600 = vunpack.c.l.b16 %v1402
        %v1601 = vunpack.c.h.b16 %v1402
        %v1602 = vunpack.c.l.b16 %v1403
        %v1603 = vunpack.c.h.b16 %v1403
        %v1604 = vunpack.c.l.b16 %v1404
        %v1605 = vunpack.c.h.b16 %v1404
        %v1606 = vunpack.c.l.b16 %v1405
        %v1607 = vunpack.c.h.b16 %v1405
        %v1608 = vunpack.c.l.b16 %v1406
        %v1609 = vunpack.c.h.b16 %v1406
        %v1610 = vunpack.c.l.b16 %v1407
        %v1611 = vunpack.c.h.b16 %v1407
        %v1612 = vunpack.c.l.b16 %v1408
        %v1613 = vunpack.c.h.b16 %v1408
        %v1614 = vunpack.c.l.b16 %v1409
        %v1615 = vunpack.c.h.b16 %v1409
        %v1616 = vunpack.c.l.b16 %v1410
        %v1617 = vunpack.c.h.b16 %v1410
        %v1618 = vunpack.c.l.b16 %v1411
        %v1619 = vunpack.c.h.b16 %v1411
        %v1620 = vunpack.c.l.b16 %v1412
        %v1621 = vunpack.c.h.b16 %v1412
        %v1622 = vunpack.c.l.b16 %v1413
        %v1623 = vunpack.c.h.b16 %v1413
        %v1624 = vunpack.c.l.b16 %v1414
        %v1625 = vunpack.c.h.b16 %v1414
        %v1626 = vunpack.c.l.b16 %v1415
        %v1627 = vunpack.c.h.b16 %v1415
        %v1628 = vunpack.c.l.b16 %v1416
        %v1629 = vunpack.c.h.b16 %v1416
        %v1630 = vunpack.c.l.b16 %v1417
        %v1631 = vunpack.c.h.b16 %v1417
        %v1632 = vunpack.c.l.b16 %v1418
        %v1633 = vunpack.c.h.b16 %v1418
        %v1634 = vunpack.c.l.b16 %v1419
        %v1635 = vunpack.c.h.b16 %v1419
        %v1636 = vunpack.c.l.b16 %v1420
        %v1637 = vunpack.c.h.b16 %v1420
        %v1638 = vunpack.c.l.b16 %v1421
        %v1639 = vunpack.c.h.b16 %v1421
        %v1640 = vunpack.c.l.b16 %v1422
        %v1641 = vunpack.c.h.b16 %v1422
        %v1642 = vunpack.c.l.b16 %v1423
        %v1643 = vunpack.c.h.b16 %v1423
        %v1644 = vunpack.c.l.b16 %v1424
        %v1645 = vunpack.c.h.b16 %v1424
        %v1646 = vunpack.c.l.b16 %v1425
        %v1647 = vunpack.c.h.b16 %v1425
        %v1648 = vunpack.c.l.b16 %v1426
        %v1649 = vunpack.c.h.b16 %v1426
        %v1650 = vunpack.c.l.b16 %v1427
        %v1651 = vunpack.c.h.b16 %v1427
        %v1652 = vunpack.c.l.b16 %v1428
        %v1653 = vunpack.c.h.b16 %v1428
        %v1654 = vunpack.c.l.b16 %v1429
        %v1655 = vunpack.c.h.b16 %v1429
        %v1656 = vunpack.c.l.b16 %v1430
        %v1657 = vunpack.c.h.b16 %v1430
        %v1658 = vunpack.c.l.b16 %v1431
        %v1659 = vunpack.c.h.b16 %v1431
        %v1660 = vunpack.c.l.b16 %v1432
        %v1661 = vunpack.c.h.b16 %v1432
        %v1662 = vunpack.c.l.b16 %v1433
        %v1663 = vunpack.c.h.b16 %v1433
        %v1664 = vunpack.c.l.b16 %v1434
        %v1665 = vunpack.c.h.b16 %v1434
        %v1666 = vunpack.c.l.b16 %v1435
        %v1667 = vunpack.c.h.b16 %v1435
        %v1668 = vunpack.c.l.b16 %v1436
        %v1669 = vunpack.c.h.b16 %v1436
        %v1670 = vunpack.c.l.b16 %v1437
        %v1671 = vunpack.c.h.b16 %v1437
        %v1672 = vunpack.c.l.b16 %v1438
        %v1673 = vunpack.c.h.b16 %v1438
        %v1674 = vunpack.c.l.b16 %v1439
        %v1675 = vunpack.c.h.b16 %v1439
        %v1676 = vunpack.c.l.b16 %v1440
        %v1677 = vunpack.c.h.b16 %v1440
        %v1678 = vunpack.c.l.b16 %v1441
        %v1679 = vunpack.c.h.b16 %v1441
        %v1680 = vunpack.c.l.b16 %v1442
        %v1681 = vunpack.c.h.b16 %v1442
        %v1682 = vunpack.c.l.b16 %v1443
        %v1683 = vunpack.c.h.b16 %v1443
        %v1684 = vunpack.c.l.b16 %v1444
        %v1685 = vunpack.c.h.b16 %v1444
        %v1686 = vunpack.c.l.b16 %v1445
        %v1687 = vunpack.c.h.b16 %v1445
        %v1688 = vunpack.c.l.b16 %v1446
        %v1689 = vunpack.c.h.b16 %v1446
        %v1690 = vunpack.c.l.b16 %v1447
        %v1691 = vunpack.c.h.b16 %v1447
        %v1692 = vunpack.c.l.b16 %v1448
        %v1693 = vunpack.c.h.b16 %v1448
        %v1694 = vunpack.c.l.b16 %v1449
        %v1695 = vunpack.c.h.b16 %v1449
        %v1696 = vunpack.c.l.b16 %v1450
        %v1697 = vunpack.c.h.b16 %v1450
        %v1698 = vunpack.c.l.b16 %v1451
        %v1699 = vunpack.c.h.b16 %v1451
        %v1700 = vunpack.c.l.b16 %v1452
        %v1701 = vunpack.c.h.b16 %v1452
        %v1702 = vunpack.c.l.b16 %v1453
        %v1703 = vunpack.c.h.b16 %v1453
        %v1704 = vunpack.c.l.b16 %v1454
        %v1705 = vunpack.c.h.b16 %v1454
        %v1706 = vunpack.c.l.b16 %v1455
        %v1707 = vunpack.c.h.b16 %v1455
        %v1708 = vunpack.c.l.b16 %v1456
        %v1709 = vunpack.c.h.b16 %v1456
        %v1710 = vunpack.c.l.b16 %v1457
        %v1711 = vunpack.c.h.b16 %v1457
        %v1712 = vunpack.c.l.b16 %v1458
        %v1713 = vunpack.c.h.b16 %v1458
        %v1714 = vunpack.c.l.b16 %v1459
        %v1715 = vunpack.c.h.b16 %v1459
        %v1716 = vunpack.c.l.b16 %v1460
        %v1717 = vunpack.c.h.b16 %v1460
        %v1718 = vunpack.c.l.b16 %v1461
        %v1719 = vunpack.c.h.b16 %v1461
        %v1720 = vunpack.c.l.b16 %v1462
        %v1721 = vunpack.c.h.b16 %v1462
        %v1722 = vunpack.c.l.b16 %v1463
        %v1723 = vunpack.c.h.b16 %v1463
        %v1724 = vunpack.c.l.b16 %v1464
        %v1725 = vunpack.c.h.b16 %v1464
        %v1726 = vunpack.c.l.b16 %v1465
        %v1727 = vunpack.c.h.b16 %v1465
        %v1728 = vunpack.c.l.b16 %v1466
        %v1729 = vunpack.c.h.b16 %v1466
        %v1730 = vunpack.c.l.b16 %v1467
        %v1731 = vunpack.c.h.b16 %v1467
        %v1732 = vunpack.c.l.b16 %v1468
        %v1733 = vunpack.c.h.b16 %v1468
        %v1734 = vunpack.c.l.b16 %v1469
        %v1735 = vunpack.c.h.b16 %v1469
        %v1736 = vunpack.c.l.b16 %v1470
        %v1737 = vunpack.c.h.b16 %v1470
        %v1738 = vunpack.c.l.b16 %v1471
        %v1739 = vunpack.c.h.b16 %v1471
        %v1740 = vunpack.c.l.b16 %v1472
        %v1741 = vunpack.c.h.b16 %v1472
        %v1742 = vunpack.c.l.b16 %v1473
        %v1743 = vunpack.c.h.b16 %v1473
        %v1744 = vunpack.c.l.b16 %v1474
        %v1745 = vunpack.c.h.b16 %v1474
        %v1746 = vunpack.c.l.b16 %v1475
        %v1747 = vunpack.c.h.b16 %v1475
        %v1748 = vunpack.c.l.b16 %v1476
        %v1749 = vunpack.c.h.b16 %v1476
        %v1750 = vunpack.c.l.b16 %v1477
        %v1751 = vunpack.c.h.b16 %v1477
        %v1752 = vunpack.c.l.b16 %v1478
        %v1753 = vunpack.c.h.b16 %v1478
        %v1754 = vunpack.c.l.b16 %v1479
        %v1755 = vunpack.c.h.b16 %v1479
        %v1756 = vunpack.c.l.b16 %v1480
        %v1757 = vunpack.c.h.b16 %v1480
        %v1758 = vunpack.c.l.b16 %v1481
        %v1759 = vunpack.c.h.b16 %v1481
        %v1760 = vunpack.c.l.b16 %v1482
        %v1761 = vunpack.c.h.b16 %v1482
        %v1762 = vunpack.c.l.b16 %v1483
        %v1763 = vunpack.c.h.b16 %v1483
        %v1764 = vunpack.c.l.b16 %v1484
        %v1765 = vunpack.c.h.b16 %v1484
        %v1766 = vunpack.c.l.b16 %v1485
        %v1767 = vunpack.c.h.b16 %v1485
        %v1768 = vunpack.c.l.b16 %v1486
        %v1769 = vunpack.c.h.b16 %v1486
        %v1770 = vunpack.c.l.b16 %v1487
        %v1771 = vunpack.c.h.b16 %v1487
        %v1772 = vunpack.c.l.b16 %v1488
        %v1773 = vunpack.c.h.b16 %v1488
        %v1774 = vunpack.c.l.b16 %v1489
        %v1775 = vunpack.c.h.b16 %v1489
        %v1776 = vunpack.c.l.b16 %v1490
        %v1777 = vunpack.c.h.b16 %v1490
        %v1778 = vunpack.c.l.b16 %v1491
        %v1779 = vunpack.c.h.b16 %v1491
        %v1780 = vpack.c.b16 %v1594, %v1588
        %v1781 = vpack.c.b16 %v1595, %v1589
        %v1782 = vpack.c.b16 %v1596, %v1590
        %v1783 = vpack.c.b16 %v1597, %v1591
        %v1784 = vpack.c.b16 %v1598, %v1592
        %v1785 = vpack.c.b16 %v1599, %v1593
        %v1786 = vpack.c.b16 %v1606, %v1600
        %v1787 = vpack.c.b16 %v1607, %v1601
        %v1788 = vpack.c.b16 %v1608, %v1602
        %v1789 = vpack.c.b16 %v1609, %v1603
        %v1790 = vpack.c.b16 %v1610, %v1604
        %v1791 = vpack.c.b16 %v1611, %v1605
        %v1792 = vpack.c.b16 %v1618, %v1612
        %v1793 = vpack.c.b16 %v1619, %v1613
        %v1794 = vpack.c.b16 %v1620, %v1614
        %v1795 = vpack.c.b16 %v1621, %v1615
        %v1796 = vpack.c.b16 %v1622, %v1616
        %v1797 = vpack.c.b16 %v1623, %v1617
        %v1798 = vpack.c.b16 %v1630, %v1624
        %v1799 = vpack.c.b16 %v1631, %v1625
        %v1800 = vpack.c.b16 %v1632, %v1626
        %v1801 = vpack.c.b16 %v1633, %v1627
        %v1802 = vpack.c.b16 %v1634, %v1628
        %v1803 = vpack.c.b16 %v1635, %v1629
        %v1804 = vpack.c.b16 %v1642, %v1636
        %v1805 = vpack.c.b16 %v1643, %v1637
        %v1806 = vpack.c.b16 %v1644, %v1638
        %v1807 = vpack.c.b16 %v1645, %v1639
        %v1808 = vpack.c.b16 %v1646, %v1640
        %v1809 = vpack.c.b16 %v1647, %v1641
        %v1810 = vpack.c.b16 %v1654, %v1648
        %v1811 = vpack.c.b16 %v1655, %v1649
        %v1812 = vpack.c.b16 %v1656, %v1650
        %v1813 = vpack.c.b16 %v1657, %v1651
        %v1814 = vpack.c.b16 %v1658, %v1652
        %v1815 = vpack.c.b16 %v1659, %v1653
        %v1816 = vpack.c.b16 %v1666, %v1660
        %v1817 = vpack.c.b16 %v1667, %v1661
        %v1818 = vpack.c.b16 %v1668, %v1662
        %v1819 = vpack.c.b16 %v1669, %v1663
        %v1820 = vpack.c.b16 %v1670, %v1664
        %v1821 = vpack.c.b16 %v1671, %v1665
        %v1822 = vpack.c.b16 %v1678, %v1672
        %v1823 = vpack.c.b16 %v1679, %v1673
        %v1824 = vpack.c.b16 %v1680, %v1674
        %v1825 = vpack.c.b16 %v1681, %v1675
        %v1826 = vpack.c.b16 %v1682, %v1676
        %v1827 = vpack.c.b16 %v1683, %v1677
        %v1828 = vpack.c.b16 %v1690, %v1684
        %v1829 = vpack.c.b16 %v1691, %v1685
        %v1830 = vpack.c.b16 %v1692, %v1686
        %v1831 = vpack.c.b16 %v1693, %v1687
        %v1832 = vpack.c.b16 %v1694, %v1688
        %v1833 = vpack.c.b16 %v1695, %v1689
        %v1834 = vpack.c.b16 %v1702, %v1696
        %v1835 = vpack.c.b16 %v1703, %v1697
        %v1836 = vpack.c.b16 %v1704, %v1698
        %v1837 = vpack.c.b16 %v1705, %v1699
        %v1838 = vpack.c.b16 %v1706, %v1700
        %v1839 = vpack.c.b16 %v1707, %v1701
        %v1840 = vpack.c.b16 %v1714, %v1708
        %v1841 = vpack.c.b16 %v1715, %v1709
        %v1842 = vpack.c.b16 %v1716, %v1710
        %v1843 = vpack.c.b16 %v1717, %v1711
        %v1844 = vpack.c.b16 %v1718, %v1712
        %v1845 = vpack.c.b16 %v1719, %v1713
        %v1846 = vpack.c.b16 %v1726, %v1720
        %v1847 = vpack.c.b16 %v1727, %v1721
        %v1848 = vpack.c.b16 %v1728, %v1722
        %v1849 = vpack.c.b16 %v1729, %v1723
        %v1850 = vpack.c.b16 %v1730, %v1724
        %v1851 = vpack.c.b16 %v1731, %v1725
        %v1852 = vpack.c.b16 %v1738, %v1732
        %v1853 = vpack.c.b16 %v1739, %v1733
        %v1854 = vpack.c.b16 %v1740, %v1734
        %v1855 = vpack.c.b16 %v1741, %v1735
        %v1856 = vpack.c.b16 %v1742, %v1736
        %v1857 = vpack.c.b16 %v1743, %v1737
        %v1858 = vpack.c.b16 %v1750, %v1744
        %v1859 = vpack.c.b16 %v1751, %v1745
        %v1860 = vpack.c.b16 %v1752, %v1746
        %v1861 = vpack.c.b16 %v1753, %v1747
        %v1862 = vpack.c.b16 %v1754, %v1748
        %v1863 = vpack.c.b16 %v1755, %v1749
        %v1864 = vpack.c.b16 %v1762, %v1756
        %v1865 = vpack.c.b16 %v1763, %v1757
        %v1866 = vpack.c.b16 %v1764, %v1758
        %v1867 = vpack.c.b16 %v1765, %v1759
        %v1868 = vpack.c.b16 %v1766, %v1760
        %v1869 = vpack.c.b16 %v1767, %v1761
        %v1870 = vpack.c.b16 %v1774, %v1768
        %v1871 = vpack.c.b16 %v1775, %v1769
        %v1872 = vpack.c.b16 %v1776, %v1770
        %v1873 = vpack.c.b16 %v1777, %v1771
        %v1874 = vpack.c.b16 %v1778, %v1772
        %v1875 = vpack.c.b16 %v1779, %v1773
        %v1973 = vlaneseq
        %v1974 = vshrl.u32 %v1973, 7
        %v1975 = vsub.s32 0, %v1974
        %v1976 = vrot.slane %v415, %v1975
        %v1977 = vlaneseq
        %v1978 = vshrl.u32 %v1977, 7
        %v1979 = vsub.s32 1, %v1978
        %v1980 = vrot.slane %v415, %v1979
        %v1981 = vlaneseq
        %v1982 = vshrl.u32 %v1981, 7
        %v1983 = vsub.s32 2, %v1982
        %v1984 = vrot.slane %v415, %v1983
        %v1985 = vlaneseq
        %v1986 = vshrl.u32 %v1985, 7
        %v1987 = vsub.s32 3, %v1986
        %v1988 = vrot.slane %v415, %v1987
        %v1989 = vlaneseq
        %v1990 = vshrl.u32 %v1989, 7
        %v1991 = vsub.s32 4, %v1990
        %v1992 = vrot.slane %v415, %v1991
        %v1993 = vlaneseq
        %v1994 = vshrl.u32 %v1993, 7
        %v1995 = vsub.s32 5, %v1994
        %v1996 = vrot.slane %v415, %v1995
        %2003 = vmatprep.subr.bf16.mxu0 %v1823
        %2004 = vmatpush1.bf16.msra.mxu0 %v1822
        %2005 = vmatprep.subr.bf16.mxu0 %v1817
        %2006 = vmatpush1.bf16.msra.mxu0 %v1816
        %2007 = vmatprep.subr.bf16.mxu0 %v1811
        %2008 = vmatpush1.bf16.msra.mxu0 %v1810
        %2009 = vmatprep.subr.bf16.mxu0 %v1805
        %2010 = vmatpush1.bf16.msra.mxu0 %v1804
        %2011 = vmatprep.subr.bf16.mxu0 %v1799
        %2012 = vmatpush1.bf16.msra.mxu0 %v1798
        %2013 = vmatprep.subr.bf16.mxu0 %v1793
        %2014 = vmatpush1.bf16.msra.mxu0 %v1792
        %2015 = vmatprep.subr.bf16.mxu0 %v1787
        %2016 = vmatpush1.bf16.msra.mxu0 %v1786
        %2017 = vmatprep.subr.bf16.mxu0 %v1781
        %2018 = vmatpush1.bf16.msra.mxu0 %v1780
        %2019 = vmatprep.subr.bf16.mxu0 %v1871
        %2020 = vmatpush2.bf16.msra.mxu0 %v1870
        %2021 = vmatprep.subr.bf16.mxu0 %v1865
        %2022 = vmatpush2.bf16.msra.mxu0 %v1864
        %2023 = vmatprep.subr.bf16.mxu0 %v1859
        %2024 = vmatpush2.bf16.msra.mxu0 %v1858
        %2025 = vmatprep.subr.bf16.mxu0 %v1853
        %2026 = vmatpush2.bf16.msra.mxu0 %v1852
        %2027 = vmatprep.subr.bf16.mxu0 %v1847
        %2028 = vmatpush2.bf16.msra.mxu0 %v1846
        %2029 = vmatprep.subr.bf16.mxu0 %v1841
        %2030 = vmatpush2.bf16.msra.mxu0 %v1840
        %2031 = vmatprep.subr.bf16.mxu0 %v1835
        %2032 = vmatpush2.bf16.msra.mxu0 %v1834
        %2033 = vmatprep.subr.bf16.mxu0 %v1829
        %2034 = vmatpush2.bf16.msra.mxu0 %v1828
        %2035 = vmatprep.mubr.bf16.mxu0 %v428
        %2036 = vmatmul.mubr.bf16.gmra.mxu0 %v427
        %v2037 = vpop.f32.mrf.mxu0
        %v2038 = vadd.f32 %v1976, %v2037
        %v2039 = vpop.f32.mrf.mxu0
        %v2040 = vadd.f32 %v1980, %v2039
        %v2041 = vpop.f32.mrf.mxu0
        %v2042 = vpop.f32.mrf.mxu0
        %2043 = vdwg.mxu0
        %2044 = vmatprep.subr.bf16.mxu0 %v1825
        %2045 = vmatpush1.bf16.msra.mxu0 %v1824
        %2046 = vmatprep.subr.bf16.mxu0 %v1819
        %2047 = vmatpush1.bf16.msra.mxu0 %v1818
        %2048 = vmatprep.subr.bf16.mxu0 %v1813
        %2049 = vmatpush1.bf16.msra.mxu0 %v1812
        %2050 = vmatprep.subr.bf16.mxu0 %v1807
        %2051 = vmatpush1.bf16.msra.mxu0 %v1806
        %2052 = vmatprep.subr.bf16.mxu0 %v1801
        %2053 = vmatpush1.bf16.msra.mxu0 %v1800
        %2054 = vmatprep.subr.bf16.mxu0 %v1795
        %2055 = vmatpush1.bf16.msra.mxu0 %v1794
        %2056 = vmatprep.subr.bf16.mxu0 %v1789
        %2057 = vmatpush1.bf16.msra.mxu0 %v1788
        %2058 = vmatprep.subr.bf16.mxu0 %v1783
        %2059 = vmatpush1.bf16.msra.mxu0 %v1782
        %2060 = vmatprep.subr.bf16.mxu0 %v1873
        %2061 = vmatpush2.bf16.msra.mxu0 %v1872
        %2062 = vmatprep.subr.bf16.mxu0 %v1867
        %2063 = vmatpush2.bf16.msra.mxu0 %v1866
        %2064 = vmatprep.subr.bf16.mxu0 %v1861
        %2065 = vmatpush2.bf16.msra.mxu0 %v1860
        %2066 = vmatprep.subr.bf16.mxu0 %v1855
        %2067 = vmatpush2.bf16.msra.mxu0 %v1854
        %2068 = vmatprep.subr.bf16.mxu0 %v1849
        %2069 = vmatpush2.bf16.msra.mxu0 %v1848
        %2070 = vmatprep.subr.bf16.mxu0 %v1843
        %2071 = vmatpush2.bf16.msra.mxu0 %v1842
        %2072 = vmatprep.subr.bf16.mxu0 %v1837
        %2073 = vmatpush2.bf16.msra.mxu0 %v1836
        %2074 = vmatprep.subr.bf16.mxu0 %v1831
        %2075 = vmatpush2.bf16.msra.mxu0 %v1830
        %2076 = vmatprep.mubr.bf16.mxu0 %v428
        %2077 = vmatmul.mubr.bf16.gmra.mxu0 %v427
        %v2078 = vpop.f32.mrf.mxu0
        %v2079 = vadd.f32 %v1984, %v2078
        %v2080 = vpop.f32.mrf.mxu0
        %v2081 = vadd.f32 %v1988, %v2080
        %v2082 = vpop.f32.mrf.mxu0
        %v2083 = vpop.f32.mrf.mxu0
        %2084 = vdwg.mxu0
        %2085 = vmatprep.subr.bf16.mxu0 %v1827
        %2086 = vmatpush1.bf16.msra.mxu0 %v1826
        %2087 = vmatprep.subr.bf16.mxu0 %v1821
        %2088 = vmatpush1.bf16.msra.mxu0 %v1820
        %2089 = vmatprep.subr.bf16.mxu0 %v1815
        %2090 = vmatpush1.bf16.msra.mxu0 %v1814
        %2091 = vmatprep.subr.bf16.mxu0 %v1809
        %2092 = vmatpush1.bf16.msra.mxu0 %v1808
        %2093 = vmatprep.subr.bf16.mxu0 %v1803
        %2094 = vmatpush1.bf16.msra.mxu0 %v1802
        %2095 = vmatprep.subr.bf16.mxu0 %v1797
        %2096 = vmatpush1.bf16.msra.mxu0 %v1796
        %2097 = vmatprep.subr.bf16.mxu0 %v1791
        %2098 = vmatpush1.bf16.msra.mxu0 %v1790
        %2099 = vmatprep.subr.bf16.mxu0 %v1785
        %2100 = vmatpush1.bf16.msra.mxu0 %v1784
        %2101 = vmatprep.subr.bf16.mxu0 %v1875
        %2102 = vmatpush2.bf16.msra.mxu0 %v1874
        %2103 = vmatprep.subr.bf16.mxu0 %v1869
        %2104 = vmatpush2.bf16.msra.mxu0 %v1868
        %2105 = vmatprep.subr.bf16.mxu0 %v1863
        %2106 = vmatpush2.bf16.msra.mxu0 %v1862
        %2107 = vmatprep.subr.bf16.mxu0 %v1857
        %2108 = vmatpush2.bf16.msra.mxu0 %v1856
        %2109 = vmatprep.subr.bf16.mxu0 %v1851
        %2110 = vmatpush2.bf16.msra.mxu0 %v1850
        %2111 = vmatprep.subr.bf16.mxu0 %v1845
        %2112 = vmatpush2.bf16.msra.mxu0 %v1844
        %2113 = vmatprep.subr.bf16.mxu0 %v1839
        %2114 = vmatpush2.bf16.msra.mxu0 %v1838
        %2115 = vmatprep.subr.bf16.mxu0 %v1833
        %2116 = vmatpush2.bf16.msra.mxu0 %v1832
        %2117 = vmatprep.mubr.bf16.mxu0 %v428
        %2118 = vmatmul.mubr.bf16.gmra.mxu0 %v427
        %v2119 = vpop.f32.mrf.mxu0
        %v2120 = vadd.f32 %v1992, %v2119
        %v2121 = vpop.f32.mrf.mxu0
        %v2122 = vadd.f32 %v1996, %v2121
        %v2123 = vpop.f32.mrf.mxu0
        %v2124 = vpop.f32.mrf.mxu0
        %2125 = vdwg.mxu0
        %v2126 = vadd.f32 %v1308, %v2038
        %v2127 = vadd.f32 %v1310, %v2040
        %v2128 = vxor.u32 %v2126, 2147483648
        %v2129 = vxor.u32 %v2127, 2147483648
        %v2130 = vmul.f32 %v2128, 1.442695
        %v2131 = vpow.pop %v2130
        %v2132 = vmul.f32 %v2129, 1.442695
        %v2133 = vpow.pop %v2132
        %v2134 = vadd.f32 %v2131, 1.0
        %v2135 = vadd.f32 %v2133, 1.0
        %v2136 = vrcp.pop %v2134
        %v2137 = vmul.f32 1.0, %v2136
        %v2138 = vrcp.pop %v2135
        %v2139 = vmul.f32 1.0, %v2138
        %v2140 = vadd.f32 %v1349, %v2079
        %v2141 = vadd.f32 %v1351, %v2081
        %v2142 = vxor.u32 %v2140, 2147483648
        %v2143 = vxor.u32 %v2141, 2147483648
        %v2144 = vmul.f32 %v2142, 1.442695
        %v2145 = vpow.pop %v2144
        %v2146 = vmul.f32 %v2143, 1.442695
        %v2147 = vpow.pop %v2146
        %v2148 = vadd.f32 %v2145, 1.0
        %v2149 = vadd.f32 %v2147, 1.0
        %v2150 = vrcp.pop %v2148
        %v2151 = vmul.f32 1.0, %v2150
        %v2152 = vrcp.pop %v2149
        %v2153 = vmul.f32 1.0, %v2152
        %v2154 = vmul.f32 %v2137, %v2120
        %v2155 = vmul.f32 %v2139, %v2122
        %v2156 = vadd.f32 %v1390, %v2154
        %v2157 = vadd.f32 %v1392, %v2155
        %v2158 = vtanh.pop %v2156
        %v2159 = vtanh.pop %v2157
        %v2160 = vsub.f32 1.0, %v2151
        %v2161 = vsub.f32 1.0, %v2153
        %v2162 = vmul.f32 %v2160, %v2158
        %v2163 = vmul.f32 %v2161, %v2159
        %v2164 = vmul.f32 %v2151, %v420
        %v2165 = vmul.f32 %v2153, %v424
        %v2166 = vadd.f32 %v2162, %v2164
        %v2167 = vadd.f32 %v2163, %v2165
        %v2169 = vlaneseq
        %v2170 = vshrl.u32 %v2169, 7
        %v2171 = vsub.s32 0, %v2170
        %v2172 = vrot.slane %v413, %v2171
        %v2173 = vlaneseq
        %v2174 = vshrl.u32 %v2173, 7
        %v2175 = vsub.s32 1, %v2174
        %v2176 = vrot.slane %v413, %v2175
        %v2179 = vmul.f32 %v2166, %v2172
        %v2180 = vmul.f32 %v2167, %v2176
        %v2181 = vpack.c.bf16 %v2179, %v2179
        %v2182 = vpack.c.bf16 %v2180, %v2180
        %2183 = vmatprep.subr.bf16.mxu0 %v572
        %2184 = vmatpush1.bf16.msra.mxu0 %v571
        %2185 = vmatprep.subr.bf16.mxu0 %v570
        %2186 = vmatpush1.bf16.msra.mxu0 %v569
        %2187 = vmatprep.subr.bf16.mxu0 %v568
        %2188 = vmatpush1.bf16.msra.mxu0 %v567
        %2189 = vmatprep.subr.bf16.mxu0 %v566
        %2190 = vmatpush1.bf16.msra.mxu0 %v565
        %2191 = vmatprep.subr.bf16.mxu0 %v564
        %2192 = vmatpush1.bf16.msra.mxu0 %v563
        %2193 = vmatprep.subr.bf16.mxu0 %v562
        %2194 = vmatpush1.bf16.msra.mxu0 %v561
        %2195 = vmatprep.subr.bf16.mxu0 %v560
        %2196 = vmatpush1.bf16.msra.mxu0 %v559
        %2197 = vmatprep.subr.bf16.mxu0 %v558
        %2198 = vmatpush1.bf16.msra.mxu0 %v557
        %2199 = vmatprep.subr.bf16.mxu0 %v588
        %2200 = vmatpush2.bf16.msra.mxu0 %v587
        %2201 = vmatprep.subr.bf16.mxu0 %v586
        %2202 = vmatpush2.bf16.msra.mxu0 %v585
        %2203 = vmatprep.subr.bf16.mxu0 %v584
        %2204 = vmatpush2.bf16.msra.mxu0 %v583
        %2205 = vmatprep.subr.bf16.mxu0 %v582
        %2206 = vmatpush2.bf16.msra.mxu0 %v581
        %2207 = vmatprep.subr.bf16.mxu0 %v580
        %2208 = vmatpush2.bf16.msra.mxu0 %v579
        %2209 = vmatprep.subr.bf16.mxu0 %v578
        %2210 = vmatpush2.bf16.msra.mxu0 %v577
        %2211 = vmatprep.subr.bf16.mxu0 %v576
        %2212 = vmatpush2.bf16.msra.mxu0 %v575
        %2213 = vmatprep.subr.bf16.mxu0 %v574
        %2214 = vmatpush2.bf16.msra.mxu0 %v573
        %2215 = vmatprep.mubr.bf16.mxu0 %v2182
        %2216 = vmatmul.mubr.bf16.gmra.mxu0 %v2181
        %v2217 = vpop.f32.mrf.mxu0
        %v2218 = vadd.f32 0.0, %v2217
        %v2219 = vpop.f32.mrf.mxu0
        %v2220 = vadd.f32 0.0, %v2219
        %v2221 = vpop.f32.mrf.mxu0
        %v2222 = vpop.f32.mrf.mxu0
        %2223 = vdwg.mxu0
        %v2224 = vmul.f32 %v2218, 0.015625
        %v2225 = vmul.f32 %v2220, 0.015625
        %v2226 = vpack.c.bf16 %v2224, %v2224
        %v2227 = vpack.c.bf16 %v2225, %v2225
        %2228 = vmatprep.subr.bf16.mxu0 %v1093
        %2229 = vmatpush1.bf16.msra.mxu0 %v1092
        %2230 = vmatprep.subr.bf16.mxu0 %v1087
        %2231 = vmatpush1.bf16.msra.mxu0 %v1086
        %2232 = vmatprep.subr.bf16.mxu0 %v1081
        %2233 = vmatpush1.bf16.msra.mxu0 %v1080
        %2234 = vmatprep.subr.bf16.mxu0 %v1075
        %2235 = vmatpush1.bf16.msra.mxu0 %v1074
        %2236 = vmatprep.subr.bf16.mxu0 %v1069
        %2237 = vmatpush1.bf16.msra.mxu0 %v1068
        %2238 = vmatprep.subr.bf16.mxu0 %v1063
        %2239 = vmatpush1.bf16.msra.mxu0 %v1062
        %2240 = vmatprep.subr.bf16.mxu0 %v1057
        %2241 = vmatpush1.bf16.msra.mxu0 %v1056
        %2242 = vmatprep.subr.bf16.mxu0 %v1051
        %2243 = vmatpush1.bf16.msra.mxu0 %v1050
        %2244 = vmatprep.subr.bf16.mxu0 %v1141
        %2245 = vmatpush2.bf16.msra.mxu0 %v1140
        %2246 = vmatprep.subr.bf16.mxu0 %v1135
        %2247 = vmatpush2.bf16.msra.mxu0 %v1134
        %2248 = vmatprep.subr.bf16.mxu0 %v1129
        %2249 = vmatpush2.bf16.msra.mxu0 %v1128
        %2250 = vmatprep.subr.bf16.mxu0 %v1123
        %2251 = vmatpush2.bf16.msra.mxu0 %v1122
        %2252 = vmatprep.subr.bf16.mxu0 %v1117
        %2253 = vmatpush2.bf16.msra.mxu0 %v1116
        %2254 = vmatprep.subr.bf16.mxu0 %v1111
        %2255 = vmatpush2.bf16.msra.mxu0 %v1110
        %2256 = vmatprep.subr.bf16.mxu0 %v1105
        %2257 = vmatpush2.bf16.msra.mxu0 %v1104
        %2258 = vmatprep.subr.bf16.mxu0 %v1099
        %2259 = vmatpush2.bf16.msra.mxu0 %v1098
        %2260 = vmatprep.mubr.bf16.mxu0 %v2227
        %2261 = vmatmul.mubr.bf16.gmra.mxu0 %v2226
        %v2262 = vpop.f32.mrf.mxu0
        %v2263 = vadd.f32 %v1246, %v2262
        %v2264 = vpop.f32.mrf.mxu0
        %v2265 = vadd.f32 %v1250, %v2264
        %v2266 = vpop.f32.mrf.mxu0
        %v2267 = vpop.f32.mrf.mxu0
        %2268 = vdwg.mxu0
        %2269 = vmatprep.subr.bf16.mxu0 %v1095
        %2270 = vmatpush1.bf16.msra.mxu0 %v1094
        %2271 = vmatprep.subr.bf16.mxu0 %v1089
        %2272 = vmatpush1.bf16.msra.mxu0 %v1088
        %2273 = vmatprep.subr.bf16.mxu0 %v1083
        %2274 = vmatpush1.bf16.msra.mxu0 %v1082
        %2275 = vmatprep.subr.bf16.mxu0 %v1077
        %2276 = vmatpush1.bf16.msra.mxu0 %v1076
        %2277 = vmatprep.subr.bf16.mxu0 %v1071
        %2278 = vmatpush1.bf16.msra.mxu0 %v1070
        %2279 = vmatprep.subr.bf16.mxu0 %v1065
        %2280 = vmatpush1.bf16.msra.mxu0 %v1064
        %2281 = vmatprep.subr.bf16.mxu0 %v1059
        %2282 = vmatpush1.bf16.msra.mxu0 %v1058
        %2283 = vmatprep.subr.bf16.mxu0 %v1053
        %2284 = vmatpush1.bf16.msra.mxu0 %v1052
        %2285 = vmatprep.subr.bf16.mxu0 %v1143
        %2286 = vmatpush2.bf16.msra.mxu0 %v1142
        %2287 = vmatprep.subr.bf16.mxu0 %v1137
        %2288 = vmatpush2.bf16.msra.mxu0 %v1136
        %2289 = vmatprep.subr.bf16.mxu0 %v1131
        %2290 = vmatpush2.bf16.msra.mxu0 %v1130
        %2291 = vmatprep.subr.bf16.mxu0 %v1125
        %2292 = vmatpush2.bf16.msra.mxu0 %v1124
        %2293 = vmatprep.subr.bf16.mxu0 %v1119
        %2294 = vmatpush2.bf16.msra.mxu0 %v1118
        %2295 = vmatprep.subr.bf16.mxu0 %v1113
        %2296 = vmatpush2.bf16.msra.mxu0 %v1112
        %2297 = vmatprep.subr.bf16.mxu0 %v1107
        %2298 = vmatpush2.bf16.msra.mxu0 %v1106
        %2299 = vmatprep.subr.bf16.mxu0 %v1101
        %2300 = vmatpush2.bf16.msra.mxu0 %v1100
        %2301 = vmatprep.mubr.bf16.mxu0 %v2227
        %2302 = vmatmul.mubr.bf16.gmra.mxu0 %v2226
        %v2303 = vpop.f32.mrf.mxu0
        %v2304 = vadd.f32 %v1254, %v2303
        %v2305 = vpop.f32.mrf.mxu0
        %v2306 = vadd.f32 %v1258, %v2305
        %v2307 = vpop.f32.mrf.mxu0
        %v2308 = vpop.f32.mrf.mxu0
        %2309 = vdwg.mxu0
        %2310 = vmatprep.subr.bf16.mxu0 %v1097
        %2311 = vmatpush1.bf16.msra.mxu0 %v1096
        %2312 = vmatprep.subr.bf16.mxu0 %v1091
        %2313 = vmatpush1.bf16.msra.mxu0 %v1090
        %2314 = vmatprep.subr.bf16.mxu0 %v1085
        %2315 = vmatpush1.bf16.msra.mxu0 %v1084
        %2316 = vmatprep.subr.bf16.mxu0 %v1079
        %2317 = vmatpush1.bf16.msra.mxu0 %v1078
        %2318 = vmatprep.subr.bf16.mxu0 %v1073
        %2319 = vmatpush1.bf16.msra.mxu0 %v1072
        %2320 = vmatprep.subr.bf16.mxu0 %v1067
        %2321 = vmatpush1.bf16.msra.mxu0 %v1066
        %2322 = vmatprep.subr.bf16.mxu0 %v1061
        %2323 = vmatpush1.bf16.msra.mxu0 %v1060
        %2324 = vmatprep.subr.bf16.mxu0 %v1055
        %2325 = vmatpush1.bf16.msra.mxu0 %v1054
        %2326 = vmatprep.subr.bf16.mxu0 %v1145
        %2327 = vmatpush2.bf16.msra.mxu0 %v1144
        %2328 = vmatprep.subr.bf16.mxu0 %v1139
        %2329 = vmatpush2.bf16.msra.mxu0 %v1138
        %2330 = vmatprep.subr.bf16.mxu0 %v1133
        %2331 = vmatpush2.bf16.msra.mxu0 %v1132
        %2332 = vmatprep.subr.bf16.mxu0 %v1127
        %2333 = vmatpush2.bf16.msra.mxu0 %v1126
        %2334 = vmatprep.subr.bf16.mxu0 %v1121
        %2335 = vmatpush2.bf16.msra.mxu0 %v1120
        %2336 = vmatprep.subr.bf16.mxu0 %v1115
        %2337 = vmatpush2.bf16.msra.mxu0 %v1114
        %2338 = vmatprep.subr.bf16.mxu0 %v1109
        %2339 = vmatpush2.bf16.msra.mxu0 %v1108
        %2340 = vmatprep.subr.bf16.mxu0 %v1103
        %2341 = vmatpush2.bf16.msra.mxu0 %v1102
        %2342 = vmatprep.mubr.bf16.mxu0 %v2227
        %2343 = vmatmul.mubr.bf16.gmra.mxu0 %v2226
        %v2344 = vpop.f32.mrf.mxu0
        %v2345 = vadd.f32 %v1262, %v2344
        %v2346 = vpop.f32.mrf.mxu0
        %v2347 = vadd.f32 %v1266, %v2346
        %v2348 = vpop.f32.mrf.mxu0
        %v2349 = vpop.f32.mrf.mxu0
        %2350 = vdwg.mxu0
        %2351 = vmatprep.subr.bf16.mxu0 %v1823
        %2352 = vmatpush1.bf16.msra.mxu0 %v1822
        %2353 = vmatprep.subr.bf16.mxu0 %v1817
        %2354 = vmatpush1.bf16.msra.mxu0 %v1816
        %2355 = vmatprep.subr.bf16.mxu0 %v1811
        %2356 = vmatpush1.bf16.msra.mxu0 %v1810
        %2357 = vmatprep.subr.bf16.mxu0 %v1805
        %2358 = vmatpush1.bf16.msra.mxu0 %v1804
        %2359 = vmatprep.subr.bf16.mxu0 %v1799
        %2360 = vmatpush1.bf16.msra.mxu0 %v1798
        %2361 = vmatprep.subr.bf16.mxu0 %v1793
        %2362 = vmatpush1.bf16.msra.mxu0 %v1792
        %2363 = vmatprep.subr.bf16.mxu0 %v1787
        %2364 = vmatpush1.bf16.msra.mxu0 %v1786
        %2365 = vmatprep.subr.bf16.mxu0 %v1781
        %2366 = vmatpush1.bf16.msra.mxu0 %v1780
        %2367 = vmatprep.subr.bf16.mxu0 %v1871
        %2368 = vmatpush2.bf16.msra.mxu0 %v1870
        %2369 = vmatprep.subr.bf16.mxu0 %v1865
        %2370 = vmatpush2.bf16.msra.mxu0 %v1864
        %2371 = vmatprep.subr.bf16.mxu0 %v1859
        %2372 = vmatpush2.bf16.msra.mxu0 %v1858
        %2373 = vmatprep.subr.bf16.mxu0 %v1853
        %2374 = vmatpush2.bf16.msra.mxu0 %v1852
        %2375 = vmatprep.subr.bf16.mxu0 %v1847
        %2376 = vmatpush2.bf16.msra.mxu0 %v1846
        %2377 = vmatprep.subr.bf16.mxu0 %v1841
        %2378 = vmatpush2.bf16.msra.mxu0 %v1840
        %2379 = vmatprep.subr.bf16.mxu0 %v1835
        %2380 = vmatpush2.bf16.msra.mxu0 %v1834
        %2381 = vmatprep.subr.bf16.mxu0 %v1829
        %2382 = vmatpush2.bf16.msra.mxu0 %v1828
        %2383 = vmatprep.mubr.bf16.mxu0 %v2182
        %2384 = vmatmul.mubr.bf16.gmra.mxu0 %v2181
        %v2385 = vpop.f32.mrf.mxu0
        %v2386 = vadd.f32 %v1976, %v2385
        %v2387 = vpop.f32.mrf.mxu0
        %v2388 = vadd.f32 %v1980, %v2387
        %v2389 = vpop.f32.mrf.mxu0
        %v2390 = vpop.f32.mrf.mxu0
        %2391 = vdwg.mxu0
        %2392 = vmatprep.subr.bf16.mxu0 %v1825
        %2393 = vmatpush1.bf16.msra.mxu0 %v1824
        %2394 = vmatprep.subr.bf16.mxu0 %v1819
        %2395 = vmatpush1.bf16.msra.mxu0 %v1818
        %2396 = vmatprep.subr.bf16.mxu0 %v1813
        %2397 = vmatpush1.bf16.msra.mxu0 %v1812
        %2398 = vmatprep.subr.bf16.mxu0 %v1807
        %2399 = vmatpush1.bf16.msra.mxu0 %v1806
        %2400 = vmatprep.subr.bf16.mxu0 %v1801
        %2401 = vmatpush1.bf16.msra.mxu0 %v1800
        %2402 = vmatprep.subr.bf16.mxu0 %v1795
        %2403 = vmatpush1.bf16.msra.mxu0 %v1794
        %2404 = vmatprep.subr.bf16.mxu0 %v1789
        %2405 = vmatpush1.bf16.msra.mxu0 %v1788
        %2406 = vmatprep.subr.bf16.mxu0 %v1783
        %2407 = vmatpush1.bf16.msra.mxu0 %v1782
        %2408 = vmatprep.subr.bf16.mxu0 %v1873
        %2409 = vmatpush2.bf16.msra.mxu0 %v1872
        %2410 = vmatprep.subr.bf16.mxu0 %v1867
        %2411 = vmatpush2.bf16.msra.mxu0 %v1866
        %2412 = vmatprep.subr.bf16.mxu0 %v1861
        %2413 = vmatpush2.bf16.msra.mxu0 %v1860
        %2414 = vmatprep.subr.bf16.mxu0 %v1855
        %2415 = vmatpush2.bf16.msra.mxu0 %v1854
        %2416 = vmatprep.subr.bf16.mxu0 %v1849
        %2417 = vmatpush2.bf16.msra.mxu0 %v1848
        %2418 = vmatprep.subr.bf16.mxu0 %v1843
        %2419 = vmatpush2.bf16.msra.mxu0 %v1842
        %2420 = vmatprep.subr.bf16.mxu0 %v1837
        %2421 = vmatpush2.bf16.msra.mxu0 %v1836
        %2422 = vmatprep.subr.bf16.mxu0 %v1831
        %2423 = vmatpush2.bf16.msra.mxu0 %v1830
        %2424 = vmatprep.mubr.bf16.mxu0 %v2182
        %2425 = vmatmul.mubr.bf16.gmra.mxu0 %v2181
        %v2426 = vpop.f32.mrf.mxu0
        %v2427 = vadd.f32 %v1984, %v2426
        %v2428 = vpop.f32.mrf.mxu0
        %v2429 = vadd.f32 %v1988, %v2428
        %v2430 = vpop.f32.mrf.mxu0
        %v2431 = vpop.f32.mrf.mxu0
        %2432 = vdwg.mxu0
        %2433 = vmatprep.subr.bf16.mxu0 %v1827
        %2434 = vmatpush1.bf16.msra.mxu0 %v1826
        %2435 = vmatprep.subr.bf16.mxu0 %v1821
        %2436 = vmatpush1.bf16.msra.mxu0 %v1820
        %2437 = vmatprep.subr.bf16.mxu0 %v1815
        %2438 = vmatpush1.bf16.msra.mxu0 %v1814
        %2439 = vmatprep.subr.bf16.mxu0 %v1809
        %2440 = vmatpush1.bf16.msra.mxu0 %v1808
        %2441 = vmatprep.subr.bf16.mxu0 %v1803
        %2442 = vmatpush1.bf16.msra.mxu0 %v1802
        %2443 = vmatprep.subr.bf16.mxu0 %v1797
        %2444 = vmatpush1.bf16.msra.mxu0 %v1796
        %2445 = vmatprep.subr.bf16.mxu0 %v1791
        %2446 = vmatpush1.bf16.msra.mxu0 %v1790
        %2447 = vmatprep.subr.bf16.mxu0 %v1785
        %2448 = vmatpush1.bf16.msra.mxu0 %v1784
        %2449 = vmatprep.subr.bf16.mxu0 %v1875
        %2450 = vmatpush2.bf16.msra.mxu0 %v1874
        %2451 = vmatprep.subr.bf16.mxu0 %v1869
        %2452 = vmatpush2.bf16.msra.mxu0 %v1868
        %2453 = vmatprep.subr.bf16.mxu0 %v1863
        %2454 = vmatpush2.bf16.msra.mxu0 %v1862
        %2455 = vmatprep.subr.bf16.mxu0 %v1857
        %2456 = vmatpush2.bf16.msra.mxu0 %v1856
        %2457 = vmatprep.subr.bf16.mxu0 %v1851
        %2458 = vmatpush2.bf16.msra.mxu0 %v1850
        %2459 = vmatprep.subr.bf16.mxu0 %v1845
        %2460 = vmatpush2.bf16.msra.mxu0 %v1844
        %2461 = vmatprep.subr.bf16.mxu0 %v1839
        %2462 = vmatpush2.bf16.msra.mxu0 %v1838
        %2463 = vmatprep.subr.bf16.mxu0 %v1833
        %2464 = vmatpush2.bf16.msra.mxu0 %v1832
        %2465 = vmatprep.mubr.bf16.mxu0 %v2182
        %2466 = vmatmul.mubr.bf16.gmra.mxu0 %v2181
        %v2467 = vpop.f32.mrf.mxu0
        %v2468 = vadd.f32 %v1992, %v2467
        %v2469 = vpop.f32.mrf.mxu0
        %v2470 = vadd.f32 %v1996, %v2469
        %v2471 = vpop.f32.mrf.mxu0
        %v2472 = vpop.f32.mrf.mxu0
        %2473 = vdwg.mxu0
        %v2474 = vadd.f32 %v2263, %v2386
        %v2475 = vadd.f32 %v2265, %v2388
        %v2476 = vxor.u32 %v2474, 2147483648
        %v2477 = vxor.u32 %v2475, 2147483648
        %v2478 = vmul.f32 %v2476, 1.442695
        %v2479 = vpow.pop %v2478
        %v2480 = vmul.f32 %v2477, 1.442695
        %v2481 = vpow.pop %v2480
        %v2482 = vadd.f32 %v2479, 1.0
        %v2483 = vadd.f32 %v2481, 1.0
        %v2484 = vrcp.pop %v2482
        %v2485 = vmul.f32 1.0, %v2484
        %v2486 = vrcp.pop %v2483
        %v2487 = vmul.f32 1.0, %v2486
        %v2488 = vadd.f32 %v2304, %v2427
        %v2489 = vadd.f32 %v2306, %v2429
        %v2490 = vxor.u32 %v2488, 2147483648
        %v2491 = vxor.u32 %v2489, 2147483648
        %v2492 = vmul.f32 %v2490, 1.442695
        %v2493 = vpow.pop %v2492
        %v2494 = vmul.f32 %v2491, 1.442695
        %v2495 = vpow.pop %v2494
        %v2496 = vadd.f32 %v2493, 1.0
        %v2497 = vadd.f32 %v2495, 1.0
        %v2498 = vrcp.pop %v2496
        %v2499 = vmul.f32 1.0, %v2498
        %v2500 = vrcp.pop %v2497
        %v2501 = vmul.f32 1.0, %v2500
        %v2502 = vmul.f32 %v2485, %v2468
        %v2503 = vmul.f32 %v2487, %v2470
        %v2504 = vadd.f32 %v2345, %v2502
        %v2505 = vadd.f32 %v2347, %v2503
        %v2506 = vtanh.pop %v2504
        %v2507 = vtanh.pop %v2505
        %v2508 = vsub.f32 1.0, %v2499
        %v2509 = vsub.f32 1.0, %v2501
        %v2510 = vmul.f32 %v2508, %v2506
        %v2511 = vmul.f32 %v2509, %v2507
        %v2512 = vmul.f32 %v2499, %v2179
        %v2513 = vmul.f32 %v2501, %v2180
        %v2514 = vadd.f32 %v2510, %v2512
        %v2515 = vadd.f32 %v2511, %v2513
        %v2516 = vmul.f32 %v2514, %v2172
        %v2517 = vmul.f32 %v2515, %v2176
        %v2518 = vpack.c.bf16 %v2516, %v2516
        %v2519 = vpack.c.bf16 %v2517, %v2517
        %2520 = vmatprep.subr.bf16.mxu0 %v572
        %2521 = vmatpush1.bf16.msra.mxu0 %v571
        %2522 = vmatprep.subr.bf16.mxu0 %v570
        %2523 = vmatpush1.bf16.msra.mxu0 %v569
        %2524 = vmatprep.subr.bf16.mxu0 %v568
        %2525 = vmatpush1.bf16.msra.mxu0 %v567
        %2526 = vmatprep.subr.bf16.mxu0 %v566
        %2527 = vmatpush1.bf16.msra.mxu0 %v565
        %2528 = vmatprep.subr.bf16.mxu0 %v564
        %2529 = vmatpush1.bf16.msra.mxu0 %v563
        %2530 = vmatprep.subr.bf16.mxu0 %v562
        %2531 = vmatpush1.bf16.msra.mxu0 %v561
        %2532 = vmatprep.subr.bf16.mxu0 %v560
        %2533 = vmatpush1.bf16.msra.mxu0 %v559
        %2534 = vmatprep.subr.bf16.mxu0 %v558
        %2535 = vmatpush1.bf16.msra.mxu0 %v557
        %2536 = vmatprep.subr.bf16.mxu0 %v588
        %2537 = vmatpush2.bf16.msra.mxu0 %v587
        %2538 = vmatprep.subr.bf16.mxu0 %v586
        %2539 = vmatpush2.bf16.msra.mxu0 %v585
        %2540 = vmatprep.subr.bf16.mxu0 %v584
        %2541 = vmatpush2.bf16.msra.mxu0 %v583
        %2542 = vmatprep.subr.bf16.mxu0 %v582
        %2543 = vmatpush2.bf16.msra.mxu0 %v581
        %2544 = vmatprep.subr.bf16.mxu0 %v580
        %2545 = vmatpush2.bf16.msra.mxu0 %v579
        %2546 = vmatprep.subr.bf16.mxu0 %v578
        %2547 = vmatpush2.bf16.msra.mxu0 %v577
        %2548 = vmatprep.subr.bf16.mxu0 %v576
        %2549 = vmatpush2.bf16.msra.mxu0 %v575
        %2550 = vmatprep.subr.bf16.mxu0 %v574
        %2551 = vmatpush2.bf16.msra.mxu0 %v573
        %2552 = vmatprep.mubr.bf16.mxu0 %v2519
        %2553 = vmatmul.mubr.bf16.gmra.mxu0 %v2518
        %v2554 = vpop.f32.mrf.mxu0
        %v2555 = vadd.f32 0.0, %v2554
        %v2556 = vpop.f32.mrf.mxu0
        %v2557 = vadd.f32 0.0, %v2556
        %v2558 = vpop.f32.mrf.mxu0
        %v2559 = vpop.f32.mrf.mxu0
        %2560 = vdwg.mxu0
        %v2561 = vmul.f32 %v2555, 0.015625
        %v2562 = vmul.f32 %v2557, 0.015625
        %v2563 = vpack.c.bf16 %v2561, %v2561
        %v2564 = vpack.c.bf16 %v2562, %v2562
        %2565 = vmatprep.subr.bf16.mxu0 %v1093
        %2566 = vmatpush1.bf16.msra.mxu0 %v1092
        %2567 = vmatprep.subr.bf16.mxu0 %v1087
        %2568 = vmatpush1.bf16.msra.mxu0 %v1086
        %2569 = vmatprep.subr.bf16.mxu0 %v1081
        %2570 = vmatpush1.bf16.msra.mxu0 %v1080
        %2571 = vmatprep.subr.bf16.mxu0 %v1075
        %2572 = vmatpush1.bf16.msra.mxu0 %v1074
        %2573 = vmatprep.subr.bf16.mxu0 %v1069
        %2574 = vmatpush1.bf16.msra.mxu0 %v1068
        %2575 = vmatprep.subr.bf16.mxu0 %v1063
        %2576 = vmatpush1.bf16.msra.mxu0 %v1062
        %2577 = vmatprep.subr.bf16.mxu0 %v1057
        %2578 = vmatpush1.bf16.msra.mxu0 %v1056
        %2579 = vmatprep.subr.bf16.mxu0 %v1051
        %2580 = vmatpush1.bf16.msra.mxu0 %v1050
        %2581 = vmatprep.subr.bf16.mxu0 %v1141
        %2582 = vmatpush2.bf16.msra.mxu0 %v1140
        %2583 = vmatprep.subr.bf16.mxu0 %v1135
        %2584 = vmatpush2.bf16.msra.mxu0 %v1134
        %2585 = vmatprep.subr.bf16.mxu0 %v1129
        %2586 = vmatpush2.bf16.msra.mxu0 %v1128
        %2587 = vmatprep.subr.bf16.mxu0 %v1123
        %2588 = vmatpush2.bf16.msra.mxu0 %v1122
        %2589 = vmatprep.subr.bf16.mxu0 %v1117
        %2590 = vmatpush2.bf16.msra.mxu0 %v1116
        %2591 = vmatprep.subr.bf16.mxu0 %v1111
        %2592 = vmatpush2.bf16.msra.mxu0 %v1110
        %2593 = vmatprep.subr.bf16.mxu0 %v1105
        %2594 = vmatpush2.bf16.msra.mxu0 %v1104
        %2595 = vmatprep.subr.bf16.mxu0 %v1099
        %2596 = vmatpush2.bf16.msra.mxu0 %v1098
        %2597 = vmatprep.mubr.bf16.mxu0 %v2564
        %2598 = vmatmul.mubr.bf16.gmra.mxu0 %v2563
        %v2599 = vpop.f32.mrf.mxu0
        %v2600 = vadd.f32 %v1246, %v2599
        %v2601 = vpop.f32.mrf.mxu0
        %v2602 = vadd.f32 %v1250, %v2601
        %v2603 = vpop.f32.mrf.mxu0
        %v2604 = vpop.f32.mrf.mxu0
        %2605 = vdwg.mxu0
        %2606 = vmatprep.subr.bf16.mxu0 %v1095
        %2607 = vmatpush1.bf16.msra.mxu0 %v1094
        %2608 = vmatprep.subr.bf16.mxu0 %v1089
        %2609 = vmatpush1.bf16.msra.mxu0 %v1088
        %2610 = vmatprep.subr.bf16.mxu0 %v1083
        %2611 = vmatpush1.bf16.msra.mxu0 %v1082
        %2612 = vmatprep.subr.bf16.mxu0 %v1077
        %2613 = vmatpush1.bf16.msra.mxu0 %v1076
        %2614 = vmatprep.subr.bf16.mxu0 %v1071
        %2615 = vmatpush1.bf16.msra.mxu0 %v1070
        %2616 = vmatprep.subr.bf16.mxu0 %v1065
        %2617 = vmatpush1.bf16.msra.mxu0 %v1064
        %2618 = vmatprep.subr.bf16.mxu0 %v1059
        %2619 = vmatpush1.bf16.msra.mxu0 %v1058
        %2620 = vmatprep.subr.bf16.mxu0 %v1053
        %2621 = vmatpush1.bf16.msra.mxu0 %v1052
        %2622 = vmatprep.subr.bf16.mxu0 %v1143
        %2623 = vmatpush2.bf16.msra.mxu0 %v1142
        %2624 = vmatprep.subr.bf16.mxu0 %v1137
        %2625 = vmatpush2.bf16.msra.mxu0 %v1136
        %2626 = vmatprep.subr.bf16.mxu0 %v1131
        %2627 = vmatpush2.bf16.msra.mxu0 %v1130
        %2628 = vmatprep.subr.bf16.mxu0 %v1125
        %2629 = vmatpush2.bf16.msra.mxu0 %v1124
        %2630 = vmatprep.subr.bf16.mxu0 %v1119
        %2631 = vmatpush2.bf16.msra.mxu0 %v1118
        %2632 = vmatprep.subr.bf16.mxu0 %v1113
        %2633 = vmatpush2.bf16.msra.mxu0 %v1112
        %2634 = vmatprep.subr.bf16.mxu0 %v1107
        %2635 = vmatpush2.bf16.msra.mxu0 %v1106
        %2636 = vmatprep.subr.bf16.mxu0 %v1101
        %2637 = vmatpush2.bf16.msra.mxu0 %v1100
        %2638 = vmatprep.mubr.bf16.mxu0 %v2564
        %2639 = vmatmul.mubr.bf16.gmra.mxu0 %v2563
        %v2640 = vpop.f32.mrf.mxu0
        %v2641 = vadd.f32 %v1254, %v2640
        %v2642 = vpop.f32.mrf.mxu0
        %v2643 = vadd.f32 %v1258, %v2642
        %v2644 = vpop.f32.mrf.mxu0
        %v2645 = vpop.f32.mrf.mxu0
        %2646 = vdwg.mxu0
        %2647 = vmatprep.subr.bf16.mxu0 %v1097
        %2648 = vmatpush1.bf16.msra.mxu0 %v1096
        %2649 = vmatprep.subr.bf16.mxu0 %v1091
        %2650 = vmatpush1.bf16.msra.mxu0 %v1090
        %2651 = vmatprep.subr.bf16.mxu0 %v1085
        %2652 = vmatpush1.bf16.msra.mxu0 %v1084
        %2653 = vmatprep.subr.bf16.mxu0 %v1079
        %2654 = vmatpush1.bf16.msra.mxu0 %v1078
        %2655 = vmatprep.subr.bf16.mxu0 %v1073
        %2656 = vmatpush1.bf16.msra.mxu0 %v1072
        %2657 = vmatprep.subr.bf16.mxu0 %v1067
        %2658 = vmatpush1.bf16.msra.mxu0 %v1066
        %2659 = vmatprep.subr.bf16.mxu0 %v1061
        %2660 = vmatpush1.bf16.msra.mxu0 %v1060
        %2661 = vmatprep.subr.bf16.mxu0 %v1055
        %2662 = vmatpush1.bf16.msra.mxu0 %v1054
        %2663 = vmatprep.subr.bf16.mxu0 %v1145
        %2664 = vmatpush2.bf16.msra.mxu0 %v1144
        %2665 = vmatprep.subr.bf16.mxu0 %v1139
        %2666 = vmatpush2.bf16.msra.mxu0 %v1138
        %2667 = vmatprep.subr.bf16.mxu0 %v1133
        %2668 = vmatpush2.bf16.msra.mxu0 %v1132
        %2669 = vmatprep.subr.bf16.mxu0 %v1127
        %2670 = vmatpush2.bf16.msra.mxu0 %v1126
        %2671 = vmatprep.subr.bf16.mxu0 %v1121
        %2672 = vmatpush2.bf16.msra.mxu0 %v1120
        %2673 = vmatprep.subr.bf16.mxu0 %v1115
        %2674 = vmatpush2.bf16.msra.mxu0 %v1114
        %2675 = vmatprep.subr.bf16.mxu0 %v1109
        %2676 = vmatpush2.bf16.msra.mxu0 %v1108
        %2677 = vmatprep.subr.bf16.mxu0 %v1103
        %2678 = vmatpush2.bf16.msra.mxu0 %v1102
        %2679 = vmatprep.mubr.bf16.mxu0 %v2564
        %2680 = vmatmul.mubr.bf16.gmra.mxu0 %v2563
        %v2681 = vpop.f32.mrf.mxu0
        %v2682 = vadd.f32 %v1262, %v2681
        %v2683 = vpop.f32.mrf.mxu0
        %v2684 = vadd.f32 %v1266, %v2683
        %v2685 = vpop.f32.mrf.mxu0
        %v2686 = vpop.f32.mrf.mxu0
        %2687 = vdwg.mxu0
        %2688 = vmatprep.subr.bf16.mxu0 %v1823
        %2689 = vmatpush1.bf16.msra.mxu0 %v1822
        %2690 = vmatprep.subr.bf16.mxu0 %v1817
        %2691 = vmatpush1.bf16.msra.mxu0 %v1816
        %2692 = vmatprep.subr.bf16.mxu0 %v1811
        %2693 = vmatpush1.bf16.msra.mxu0 %v1810
        %2694 = vmatprep.subr.bf16.mxu0 %v1805
        %2695 = vmatpush1.bf16.msra.mxu0 %v1804
        %2696 = vmatprep.subr.bf16.mxu0 %v1799
        %2697 = vmatpush1.bf16.msra.mxu0 %v1798
        %2698 = vmatprep.subr.bf16.mxu0 %v1793
        %2699 = vmatpush1.bf16.msra.mxu0 %v1792
        %2700 = vmatprep.subr.bf16.mxu0 %v1787
        %2701 = vmatpush1.bf16.msra.mxu0 %v1786
        %2702 = vmatprep.subr.bf16.mxu0 %v1781
        %2703 = vmatpush1.bf16.msra.mxu0 %v1780
        %2704 = vmatprep.subr.bf16.mxu0 %v1871
        %2705 = vmatpush2.bf16.msra.mxu0 %v1870
        %2706 = vmatprep.subr.bf16.mxu0 %v1865
        %2707 = vmatpush2.bf16.msra.mxu0 %v1864
        %2708 = vmatprep.subr.bf16.mxu0 %v1859
        %2709 = vmatpush2.bf16.msra.mxu0 %v1858
        %2710 = vmatprep.subr.bf16.mxu0 %v1853
        %2711 = vmatpush2.bf16.msra.mxu0 %v1852
        %2712 = vmatprep.subr.bf16.mxu0 %v1847
        %2713 = vmatpush2.bf16.msra.mxu0 %v1846
        %2714 = vmatprep.subr.bf16.mxu0 %v1841
        %2715 = vmatpush2.bf16.msra.mxu0 %v1840
        %2716 = vmatprep.subr.bf16.mxu0 %v1835
        %2717 = vmatpush2.bf16.msra.mxu0 %v1834
        %2718 = vmatprep.subr.bf16.mxu0 %v1829
        %2719 = vmatpush2.bf16.msra.mxu0 %v1828
        %2720 = vmatprep.mubr.bf16.mxu0 %v2519
        %2721 = vmatmul.mubr.bf16.gmra.mxu0 %v2518
        %v2722 = vpop.f32.mrf.mxu0
        %v2723 = vadd.f32 %v1976, %v2722
        %v2724 = vpop.f32.mrf.mxu0
        %v2725 = vadd.f32 %v1980, %v2724
        %v2726 = vpop.f32.mrf.mxu0
        %v2727 = vpop.f32.mrf.mxu0
        %2728 = vdwg.mxu0
        %2729 = vmatprep.subr.bf16.mxu0 %v1825
        %2730 = vmatpush1.bf16.msra.mxu0 %v1824
        %2731 = vmatprep.subr.bf16.mxu0 %v1819
        %2732 = vmatpush1.bf16.msra.mxu0 %v1818
        %2733 = vmatprep.subr.bf16.mxu0 %v1813
        %2734 = vmatpush1.bf16.msra.mxu0 %v1812
        %2735 = vmatprep.subr.bf16.mxu0 %v1807
        %2736 = vmatpush1.bf16.msra.mxu0 %v1806
        %2737 = vmatprep.subr.bf16.mxu0 %v1801
        %2738 = vmatpush1.bf16.msra.mxu0 %v1800
        %2739 = vmatprep.subr.bf16.mxu0 %v1795
        %2740 = vmatpush1.bf16.msra.mxu0 %v1794
        %2741 = vmatprep.subr.bf16.mxu0 %v1789
        %2742 = vmatpush1.bf16.msra.mxu0 %v1788
        %2743 = vmatprep.subr.bf16.mxu0 %v1783
        %2744 = vmatpush1.bf16.msra.mxu0 %v1782
        %2745 = vmatprep.subr.bf16.mxu0 %v1873
        %2746 = vmatpush2.bf16.msra.mxu0 %v1872
        %2747 = vmatprep.subr.bf16.mxu0 %v1867
        %2748 = vmatpush2.bf16.msra.mxu0 %v1866
        %2749 = vmatprep.subr.bf16.mxu0 %v1861
        %2750 = vmatpush2.bf16.msra.mxu0 %v1860
        %2751 = vmatprep.subr.bf16.mxu0 %v1855
        %2752 = vmatpush2.bf16.msra.mxu0 %v1854
        %2753 = vmatprep.subr.bf16.mxu0 %v1849
        %2754 = vmatpush2.bf16.msra.mxu0 %v1848
        %2755 = vmatprep.subr.bf16.mxu0 %v1843
        %2756 = vmatpush2.bf16.msra.mxu0 %v1842
        %2757 = vmatprep.subr.bf16.mxu0 %v1837
        %2758 = vmatpush2.bf16.msra.mxu0 %v1836
        %2759 = vmatprep.subr.bf16.mxu0 %v1831
        %2760 = vmatpush2.bf16.msra.mxu0 %v1830
        %2761 = vmatprep.mubr.bf16.mxu0 %v2519
        %2762 = vmatmul.mubr.bf16.gmra.mxu0 %v2518
        %v2763 = vpop.f32.mrf.mxu0
        %v2764 = vadd.f32 %v1984, %v2763
        %v2765 = vpop.f32.mrf.mxu0
        %v2766 = vadd.f32 %v1988, %v2765
        %v2767 = vpop.f32.mrf.mxu0
        %v2768 = vpop.f32.mrf.mxu0
        %2769 = vdwg.mxu0
        %2770 = vmatprep.subr.bf16.mxu0 %v1827
        %2771 = vmatpush1.bf16.msra.mxu0 %v1826
        %2772 = vmatprep.subr.bf16.mxu0 %v1821
        %2773 = vmatpush1.bf16.msra.mxu0 %v1820
        %2774 = vmatprep.subr.bf16.mxu0 %v1815
        %2775 = vmatpush1.bf16.msra.mxu0 %v1814
        %2776 = vmatprep.subr.bf16.mxu0 %v1809
        %2777 = vmatpush1.bf16.msra.mxu0 %v1808
        %2778 = vmatprep.subr.bf16.mxu0 %v1803
        %2779 = vmatpush1.bf16.msra.mxu0 %v1802
        %2780 = vmatprep.subr.bf16.mxu0 %v1797
        %2781 = vmatpush1.bf16.msra.mxu0 %v1796
        %2782 = vmatprep.subr.bf16.mxu0 %v1791
        %2783 = vmatpush1.bf16.msra.mxu0 %v1790
        %2784 = vmatprep.subr.bf16.mxu0 %v1785
        %2785 = vmatpush1.bf16.msra.mxu0 %v1784
        %2786 = vmatprep.subr.bf16.mxu0 %v1875
        %2787 = vmatpush2.bf16.msra.mxu0 %v1874
        %2788 = vmatprep.subr.bf16.mxu0 %v1869
        %2789 = vmatpush2.bf16.msra.mxu0 %v1868
        %2790 = vmatprep.subr.bf16.mxu0 %v1863
        %2791 = vmatpush2.bf16.msra.mxu0 %v1862
        %2792 = vmatprep.subr.bf16.mxu0 %v1857
        %2793 = vmatpush2.bf16.msra.mxu0 %v1856
        %2794 = vmatprep.subr.bf16.mxu0 %v1851
        %2795 = vmatpush2.bf16.msra.mxu0 %v1850
        %2796 = vmatprep.subr.bf16.mxu0 %v1845
        %2797 = vmatpush2.bf16.msra.mxu0 %v1844
        %2798 = vmatprep.subr.bf16.mxu0 %v1839
        %2799 = vmatpush2.bf16.msra.mxu0 %v1838
        %2800 = vmatprep.subr.bf16.mxu0 %v1833
        %2801 = vmatpush2.bf16.msra.mxu0 %v1832
        %2802 = vmatprep.mubr.bf16.mxu0 %v2519
        %2803 = vmatmul.mubr.bf16.gmra.mxu0 %v2518
        %v2804 = vpop.f32.mrf.mxu0
        %v2805 = vadd.f32 %v1992, %v2804
        %v2806 = vpop.f32.mrf.mxu0
        %v2807 = vadd.f32 %v1996, %v2806
        %v2808 = vpop.f32.mrf.mxu0
        %v2809 = vpop.f32.mrf.mxu0
        %2810 = vdwg.mxu0
        %v2811 = vadd.f32 %v2600, %v2723
        %v2812 = vadd.f32 %v2602, %v2725
        %v2813 = vxor.u32 %v2811, 2147483648
        %v2814 = vxor.u32 %v2812, 2147483648
        %v2815 = vmul.f32 %v2813, 1.442695
        %v2816 = vpow.pop %v2815
        %v2817 = vmul.f32 %v2814, 1.442695
        %v2818 = vpow.pop %v2817
        %v2819 = vadd.f32 %v2816, 1.0
        %v2820 = vadd.f32 %v2818, 1.0
        %v2821 = vrcp.pop %v2819
        %v2822 = vmul.f32 1.0, %v2821
        %v2823 = vrcp.pop %v2820
        %v2824 = vmul.f32 1.0, %v2823
        %v2825 = vadd.f32 %v2641, %v2764
        %v2826 = vadd.f32 %v2643, %v2766
        %v2827 = vxor.u32 %v2825, 2147483648
        %v2828 = vxor.u32 %v2826, 2147483648
        %v2829 = vmul.f32 %v2827, 1.442695
        %v2830 = vpow.pop %v2829
        %v2831 = vmul.f32 %v2828, 1.442695
        %v2832 = vpow.pop %v2831
        %v2833 = vadd.f32 %v2830, 1.0
        %v2834 = vadd.f32 %v2832, 1.0
        %v2835 = vrcp.pop %v2833
        %v2836 = vmul.f32 1.0, %v2835
        %v2837 = vrcp.pop %v2834
        %v2838 = vmul.f32 1.0, %v2837
        %v2839 = vmul.f32 %v2822, %v2805
        %v2840 = vmul.f32 %v2824, %v2807
        %v2841 = vadd.f32 %v2682, %v2839
        %v2842 = vadd.f32 %v2684, %v2840
        %v2843 = vtanh.pop %v2841
        %v2844 = vtanh.pop %v2842
        %v2845 = vsub.f32 1.0, %v2836
        %v2846 = vsub.f32 1.0, %v2838
        %v2847 = vmul.f32 %v2845, %v2843
        %v2848 = vmul.f32 %v2846, %v2844
        %v2849 = vmul.f32 %v2836, %v2516
        %v2850 = vmul.f32 %v2838, %v2517
        %v2851 = vadd.f32 %v2847, %v2849
        %v2852 = vadd.f32 %v2848, %v2850
        %v2853 = vmul.f32 %v2851, %v2172
        %v2854 = vmul.f32 %v2852, %v2176
        %v2857 = vcombine.low %v2853, %v2854
        %v2859 = vunpack.c.l.s4 1966171168
        %v2860 = vunpack.c.0.s8 %v2859
        %v2861 = vlaneseq
        %v2862 = vshrl.u32 %v2861, 7
        %v2863 = vsub.s32 %v2860, %v2862
        %v2864 = vrot.slane %v2857, %v2863
        %v2866 = vunpack.c.l.s4 1966171168
        %v2867 = vunpack.c.0.s8 %v2866
        %v2868 = vlaneseq
        %v2869 = vshrl.u32 %v2868, 7
        %v2870 = vsub.s32 %v2867, %v2869
        %v2871 = vrot.slane %v2864, %v2870
        %v2873 = vlaneseq
        %vm2874 = vcmp.ge.s32.totalorder %v2873, 0
        %vm2875 = vcmp.lt.s32.totalorder %v2873, 256
        %vm2876 = vmand %vm2874, %vm2875
        %2877 = vst.msk [vmem:[%s411] sm:$0x3] %vm2876, %v2871
        %s2878 = sand.u32 %s199, 1
        %s2879 = scalar_lea.sflag [#allocation4], %s2878
        %s2880 = sand.u32 %s199, 1
        %s2881 = smul.addr %s2880, 2
        %s2882 = scalar_lea.vmem [#allocation13], %s2881
        // Predicated region
        $region73: #{tpu_custom_call.1} parent=47 // pred_check
          %p2883 = pneg %p209
        $region74: #{tpu_custom_call.1} parent=47 // pred_check_branch
          %2885 = sbr.rel (%p2883) target = $region76
        $region75: #{tpu_custom_call.1} parent=47 // pred_region
          %s2887 = ssub.s32 32, 32
          %2888 = vsyncadd %s2879, %s2887
          %s2889 = smul.addr %s29, 2
          %s2890 = smul.addr %s2889, 16
          %s2891 = scalar_lea.hbm %s7, %s2890
          %s2893 = sshll.u32 %s2882, 4
          %s2894 = int_to_ptr.vmem [resolvable:$true] %s2893
          %2896 = dma.vmem_to_hbm [thread:$0]  %s2894, 32, %s2891, %s2879
        $region76: #{tpu_custom_call.1} parent=47 // pred_fallthru
          _
      $region48: #{tpu_custom_call.1} parent=5 // pred_fallthru
        _
      %p2897 = scmp.le.s32.totalorder 2, %s24
      // Predicated region
      $region77: #{tpu_custom_call.1} parent=5 // pred_check
        %p2898 = pneg %p2897
      $region78: #{tpu_custom_call.1} parent=5 // pred_check_branch
        %2900 = sbr.rel (%p2898) target = $region80
      $region79: #{tpu_custom_call.1} parent=5 // pred_region
        %s2901 = ssub.s32 %s24, 2
        // Predicated region
        $region81: #{tpu_custom_call.1} parent=79 // pred_check
          %p2902 = pneg %p215
        $region82: #{tpu_custom_call.1} parent=79 // pred_check_branch
          %2904 = sbr.rel (%p2902) target = $region84
        $region83: #{tpu_custom_call.1} parent=79 // pred_region
          %s2905 = sand.u32 %s200, 1
          %s2906 = scalar_lea.sflag [#allocation4], %s2905
          %s2907 = sand.u32 %s200, 1
          %s2908 = smul.addr %s2907, 2
          %s2909 = scalar_lea.vmem [#allocation13], %s2908
          %2910 = dma.done %s2906, 32
        $region84: #{tpu_custom_call.1} parent=79 // pred_fallthru
          _
      $region80: #{tpu_custom_call.1} parent=5 // pred_fallthru
        _
    $region6: #{tpu_custom_call.1} parent=1 // loop_footer
      %s28 = sadd.s32 1, %s24
    $region7: #{tpu_custom_call.1} parent=1 // loop_footer_branch
      %23 = sbr.rel target = $region3
    $region8: #{tpu_custom_call.1} parent=1 // loop_exit
      _
    %2911 = vsyncpa [#allocation3], 1
    %s2912 = scalar_lea.sflag [#allocation3], 1
    %2913 = vsyncpa %s2912, 1
    %2914 = vsyncpa [#allocation6], 1
    %s2915 = scalar_lea.sflag [#allocation6], 1
    %2916 = vsyncpa %s2915, 1
    %2917 = vsyncpa [#allocation9], 1
    %2918 = vsyncpa [#allocation12], 1
    %2919 = vsyncpa [#allocation4], 1
    %s2920 = scalar_lea.sflag [#allocation4], 1
    %2921 = vsyncpa %s2920, 1

</llo_original>
